<compile_context>
chip_gen: v7x
topology: tpu7x:2x2x1
jax: 0.10.0
libtpu: 0.0.40
codegen_flags: <defaults>
</compile_context>

<pallas_src>
import jax
import jax.numpy as jnp
from jax import lax
from jax.experimental import pallas as pl
from jax.experimental.pallas import tpu as pltpu


def _lstm_net_kernel(xz0_ref,     # (T, B, 4H) precomputed emb @ Wih0^T + b0, time-major
                     whh0_ref,    # (H, 4H)    layer-0 recurrent weights
                     w1_ref,      # (2H, 4H)   layer-1 stacked [Wih1^T; Whh1^T]
                     b1_ref,      # (1, 4H)    b_ih_l1 + b_hh_l1
                     wout_ref,    # (H, Opad)  output weights (cols zero-padded)
                     bout_ref,    # (1, Opad)  output bias (zero-padded)
                     out_ref):    # (B, Opad)
    T, B, H4 = xz0_ref.shape
    H = H4 // 4

    whh0 = whh0_ref[...]
    w1 = w1_ref[...]
    # Hoisted once: JAX does not CSE broadcast_in_dim, keep it out of the loop.
    b1 = jnp.broadcast_to(b1_ref[...], (B, H4))

    def cell(z, c):
        # PyTorch gate order along lanes: [i | f | g | o], each H wide.
        sg = jax.nn.sigmoid(z)                  # one full-vreg EUP pass -> i, f, o
        i = sg[:, 0 * H:1 * H]
        f = sg[:, 1 * H:2 * H]
        o = sg[:, 3 * H:4 * H]
        g = jnp.tanh(z[:, 2 * H:3 * H])         # second EUP pass, g gate only
        c_new = f * c + i * g
        h_new = o * jnp.tanh(c_new)
        return h_new, c_new

    def step(t, carry):
        h0, c0, h1, c1 = carry
        # Layer 0: input projection already folded into xz0 (incl. biases).
        z0 = xz0_ref[t] + jnp.dot(h0, whh0, preferred_element_type=jnp.float32)
        h0, c0 = cell(z0, c0)
        # Layer 1: single fused matmul over [x_t(=h0), h1].
        xh = jnp.concatenate([h0, h1], axis=-1)             # (B, 2H)
        z1 = jnp.dot(xh, w1, preferred_element_type=jnp.float32) + b1
        h1, c1 = cell(z1, c1)
        return (h0, c0, h1, c1)

    zeros = jnp.zeros((B, H), jnp.float32)
    # T is static (8): fully unroll so adjacent steps' MXU/EUP/VPU work interleaves.
    _, _, h1, _ = lax.fori_loop(0, T, step, (zeros, zeros, zeros, zeros),
                                unroll=True)

    # Final Linear on last-timestep hidden state of the top layer (lane-dense O).
    out_ref[...] = (jnp.dot(h1, wout_ref[...], preferred_element_type=jnp.float32)
                    + bout_ref[...])


def init_params(key, vocab=79, input_size=8, hidden_size=32, output_size=79):
    """Deterministic synthetic parameters, PyTorch-shaped."""
    ks = jax.random.split(key, 11)
    H4 = 4 * hidden_size
    s = 1.0 / jnp.sqrt(jnp.float32(hidden_size))
    u = lambda k, shp: jax.random.uniform(k, shp, jnp.float32, -s, s)
    return {
        "embedding": jax.random.normal(ks[0], (vocab, input_size), jnp.float32),
        "w_ih_l0": u(ks[1], (H4, input_size)),
        "w_hh_l0": u(ks[2], (H4, hidden_size)),
        "b_ih_l0": u(ks[3], (H4,)),
        "b_hh_l0": u(ks[4], (H4,)),
        "w_ih_l1": u(ks[5], (H4, hidden_size)),
        "w_hh_l1": u(ks[6], (H4, hidden_size)),
        "b_ih_l1": u(ks[7], (H4,)),
        "b_hh_l1": u(ks[8], (H4,)),
        "w_out":   u(ks[9], (output_size, hidden_size)),
        "b_out":   u(ks[10], (output_size,)),
    }


def net_forward(tokens, params):
    """tokens: (B, T) int32 in [0, vocab). Returns logits (B, output_size)."""
    B, T = tokens.shape
    H = params["w_hh_l0"].shape[1]
    H4 = 4 * H
    O = params["w_out"].shape[0]
    O_pad = max(128, pl.cdiv(O, 128) * 128)

    # ---- glue / precompute (cache these if params are reused across calls) ----
    # Fold embedding gather + layer-0 input projection + layer-0 biases into one
    # (vocab, 4H) table; gather it time-major -> (T, B, 4H).
    xz0_table = (params["embedding"] @ params["w_ih_l0"].T
                 + params["b_ih_l0"] + params["b_hh_l0"])          # (vocab, 4H)
    xz0 = xz0_table[tokens.T]                                      # (T, B, 4H)

    whh0 = params["w_hh_l0"].T                                     # (H, 4H)
    # Layer-1 fused weights: [Wih1^T; Whh1^T] stacked along K -> (2H, 4H).
    w1 = jnp.concatenate([params["w_ih_l1"].T, params["w_hh_l1"].T], axis=0)
    b1 = (params["b_ih_l1"] + params["b_hh_l1"])[None, :]          # (1, 4H)

    # Lane-dense output projection: pad O -> O_pad columns.
    wout_p = jnp.zeros((H, O_pad), jnp.float32).at[:, :O].set(params["w_out"].T)
    bout_p = jnp.zeros((1, O_pad), jnp.float32).at[0, :O].set(params["b_out"])

    flops = int(T * (2 * B * H * H4 + 2 * B * (2 * H) * H4 + 12 * B * H4)
                + 2 * B * H * O_pad)
    transcendentals = int(T * 2 * B * (H4 + 2 * H))
    bytes_accessed = int(4 * (T * B * H4 + H * H4 + 2 * H * H4 + H4
                              + H * O_pad + O_pad + B * O_pad))

    vmem = pl.BlockSpec(memory_space=pltpu.MemorySpace.VMEM)
    logits_pad = pl.pallas_call(
        _lstm_net_kernel,
        out_shape=jax.ShapeDtypeStruct((B, O_pad), jnp.float32),
        in_specs=[vmem] * 6,
        out_specs=vmem,
        cost_estimate=pl.CostEstimate(flops=flops,
                                      transcendentals=transcendentals,
                                      bytes_accessed=bytes_accessed),
    )(xz0, whh0, w1, b1, wout_p, bout_p)
    return logits_pad[:, :O]


if __name__ == "__main__":
    key = jax.random.PRNGKey(0)
    k_tok, k_par = jax.random.split(key)

    # Small shapes consistent with the module: batch=2, seq=8, vocab=79,
    # embedding=8, hidden=32 (module default is 256; kept small per harness).
    B, T, VOCAB, E, H, O = 2, 8, 79, 8, 32, 79
    tokens = jax.random.randint(k_tok, (B, T), 0, VOCAB, dtype=jnp.int32)
    params = init_params(k_par, vocab=VOCAB, input_size=E,
                         hidden_size=H, output_size=O)

    fwd = jax.jit(net_forward)
    logits = fwd(tokens, params)
    jax.block_until_ready(logits)
    assert logits.shape == (B, O)
    print("KERNEL_OK")
</pallas_src>

<mosaic_0001>
module attributes {stable_mosaic.version = 11 : i64} {
  func.func @_lstm_net_kernel(%arg0: memref<8x2x128xf32, #tpu.memory_space<vmem>>, %arg1: memref<32x128xf32, #tpu.memory_space<vmem>>, %arg2: memref<64x128xf32, #tpu.memory_space<vmem>>, %arg3: memref<1x128xf32, #tpu.memory_space<vmem>>, %arg4: memref<32x128xf32, #tpu.memory_space<vmem>>, %arg5: memref<1x128xf32, #tpu.memory_space<vmem>>, %arg6: memref<2x128xf32, #tpu.memory_space<vmem>>) attributes {dimension_semantics = [], scalar_prefetch = 0 : i64, scratch_operands = 0 : i64, tpu.core_type = #tpu.core_type<tc>} {
    %c0 = arith.constant 0 : index
    %c0_0 = arith.constant 0 : index
    %0 = vector.load %arg1[%c0, %c0_0] : memref<32x128xf32, #tpu.memory_space<vmem>>, vector<32x128xf32>
    %c0_1 = arith.constant 0 : index
    %c0_2 = arith.constant 0 : index
    %1 = vector.load %arg2[%c0_1, %c0_2] : memref<64x128xf32, #tpu.memory_space<vmem>>, vector<64x128xf32>
    %c0_3 = arith.constant 0 : index
    %c0_4 = arith.constant 0 : index
    %2 = vector.load %arg3[%c0_3, %c0_4] : memref<1x128xf32, #tpu.memory_space<vmem>>, vector<1x128xf32>
    %3 = vector.shape_cast %2 : vector<1x128xf32> to vector<1x128xf32>
    %4 = vector.broadcast %3 : vector<1x128xf32> to vector<2x128xf32>
    %cst = arith.constant 0.000000e+00 : f32
    %5 = vector.broadcast %cst : f32 to vector<2x32xf32>
    %c0_i32 = arith.constant 0 : i32
    %6 = arith.index_cast %c0_i32 : i32 to index
    %c0_5 = arith.constant 0 : index
    %c0_6 = arith.constant 0 : index
    %7 = vector.load %arg0[%6, %c0_5, %c0_6] : memref<8x2x128xf32, #tpu.memory_space<vmem>>, vector<1x2x128xf32>
    %8 = vector.shape_cast %7 : vector<1x2x128xf32> to vector<2x128xf32>
    %cst_7 = arith.constant dense<0.000000e+00> : vector<2x128xf32>
    %9 = tpu.matmul %5, %0, %cst_7 {dimension_numbers = #tpu.dot_dimension_numbers<[1], [0], [0], [1], [0, 0, 1, 1], [], []>} : vector<2x32xf32>, vector<32x128xf32>, vector<2x128xf32> -> vector<2x128xf32>
    %10 = arith.addf %8, %9 : vector<2x128xf32>
    %11 = arith.negf %10 : vector<2x128xf32>
    %12 = math.exp %11 : vector<2x128xf32>
    %cst_8 = arith.constant 1.000000e+00 : f32
    %13 = vector.broadcast %cst_8 : f32 to vector<2x128xf32>
    %14 = arith.addf %13, %12 : vector<2x128xf32>
    %15 = arith.divf %13, %14 : vector<2x128xf32>
    %16 = vector.extract_strided_slice %15 {offsets = [0, 0], sizes = [2, 32], strides = [1, 1]} : vector<2x128xf32> to vector<2x32xf32>
    %17 = vector.extract_strided_slice %15 {offsets = [0, 32], sizes = [2, 32], strides = [1, 1]} : vector<2x128xf32> to vector<2x32xf32>
    %18 = vector.extract_strided_slice %15 {offsets = [0, 96], sizes = [2, 32], strides = [1, 1]} : vector<2x128xf32> to vector<2x32xf32>
    %19 = vector.extract_strided_slice %10 {offsets = [0, 64], sizes = [2, 32], strides = [1, 1]} : vector<2x128xf32> to vector<2x32xf32>
    %20 = math.tanh %19 : vector<2x32xf32>
    %21 = arith.mulf %17, %5 : vector<2x32xf32>
    %22 = arith.mulf %16, %20 : vector<2x32xf32>
    %23 = arith.addf %21, %22 : vector<2x32xf32>
    %24 = math.tanh %23 : vector<2x32xf32>
    %25 = arith.mulf %18, %24 : vector<2x32xf32>
    %26 = tpu.concatenate %25, %5 in 1 : vector<2x32xf32>, vector<2x32xf32> -> vector<2x64xf32>
    %cst_9 = arith.constant dense<0.000000e+00> : vector<2x128xf32>
    %27 = tpu.matmul %26, %1, %cst_9 {dimension_numbers = #tpu.dot_dimension_numbers<[1], [0], [0], [1], [0, 0, 1, 1], [], []>} : vector<2x64xf32>, vector<64x128xf32>, vector<2x128xf32> -> vector<2x128xf32>
    %28 = arith.addf %27, %4 : vector<2x128xf32>
    %29 = arith.negf %28 : vector<2x128xf32>
    %30 = math.exp %29 : vector<2x128xf32>
    %cst_10 = arith.constant 1.000000e+00 : f32
    %31 = vector.broadcast %cst_10 : f32 to vector<2x128xf32>
    %32 = arith.addf %31, %30 : vector<2x128xf32>
    %33 = arith.divf %31, %32 : vector<2x128xf32>
    %34 = vector.extract_strided_slice %33 {offsets = [0, 0], sizes = [2, 32], strides = [1, 1]} : vector<2x128xf32> to vector<2x32xf32>
    %35 = vector.extract_strided_slice %33 {offsets = [0, 32], sizes = [2, 32], strides = [1, 1]} : vector<2x128xf32> to vector<2x32xf32>
    %36 = vector.extract_strided_slice %33 {offsets = [0, 96], sizes = [2, 32], strides = [1, 1]} : vector<2x128xf32> to vector<2x32xf32>
    %37 = vector.extract_strided_slice %28 {offsets = [0, 64], sizes = [2, 32], strides = [1, 1]} : vector<2x128xf32> to vector<2x32xf32>
    %38 = math.tanh %37 : vector<2x32xf32>
    %39 = arith.mulf %35, %5 : vector<2x32xf32>
    %40 = arith.mulf %34, %38 : vector<2x32xf32>
    %41 = arith.addf %39, %40 : vector<2x32xf32>
    %42 = math.tanh %41 : vector<2x32xf32>
    %43 = arith.mulf %36, %42 : vector<2x32xf32>
    %c1_i32 = arith.constant 1 : i32
    %44 = arith.index_cast %c1_i32 : i32 to index
    %c0_11 = arith.constant 0 : index
    %c0_12 = arith.constant 0 : index
    %45 = vector.load %arg0[%44, %c0_11, %c0_12] : memref<8x2x128xf32, #tpu.memory_space<vmem>>, vector<1x2x128xf32>
    %46 = vector.shape_cast %45 : vector<1x2x128xf32> to vector<2x128xf32>
    %cst_13 = arith.constant dense<0.000000e+00> : vector<2x128xf32>
    %47 = tpu.matmul %25, %0, %cst_13 {dimension_numbers = #tpu.dot_dimension_numbers<[1], [0], [0], [1], [0, 0, 1, 1], [], []>} : vector<2x32xf32>, vector<32x128xf32>, vector<2x128xf32> -> vector<2x128xf32>
    %48 = arith.addf %46, %47 : vector<2x128xf32>
    %49 = arith.negf %48 : vector<2x128xf32>
    %50 = math.exp %49 : vector<2x128xf32>
    %cst_14 = arith.constant 1.000000e+00 : f32
    %51 = vector.broadcast %cst_14 : f32 to vector<2x128xf32>
    %52 = arith.addf %51, %50 : vector<2x128xf32>
    %53 = arith.divf %51, %52 : vector<2x128xf32>
    %54 = vector.extract_strided_slice %53 {offsets = [0, 0], sizes = [2, 32], strides = [1, 1]} : vector<2x128xf32> to vector<2x32xf32>
    %55 = vector.extract_strided_slice %53 {offsets = [0, 32], sizes = [2, 32], strides = [1, 1]} : vector<2x128xf32> to vector<2x32xf32>
    %56 = vector.extract_strided_slice %53 {offsets = [0, 96], sizes = [2, 32], strides = [1, 1]} : vector<2x128xf32> to vector<2x32xf32>
    %57 = vector.extract_strided_slice %48 {offsets = [0, 64], sizes = [2, 32], strides = [1, 1]} : vector<2x128xf32> to vector<2x32xf32>
    %58 = math.tanh %57 : vector<2x32xf32>
    %59 = arith.mulf %55, %23 : vector<2x32xf32>
    %60 = arith.mulf %54, %58 : vector<2x32xf32>
    %61 = arith.addf %59, %60 : vector<2x32xf32>
    %62 = math.tanh %61 : vector<2x32xf32>
    %63 = arith.mulf %56, %62 : vector<2x32xf32>
    %64 = tpu.concatenate %63, %43 in 1 : vector<2x32xf32>, vector<2x32xf32> -> vector<2x64xf32>
    %cst_15 = arith.constant dense<0.000000e+00> : vector<2x128xf32>
    %65 = tpu.matmul %64, %1, %cst_15 {dimension_numbers = #tpu.dot_dimension_numbers<[1], [0], [0], [1], [0, 0, 1, 1], [], []>} : vector<2x64xf32>, vector<64x128xf32>, vector<2x128xf32> -> vector<2x128xf32>
    %66 = arith.addf %65, %4 : vector<2x128xf32>
    %67 = arith.negf %66 : vector<2x128xf32>
    %68 = math.exp %67 : vector<2x128xf32>
    %cst_16 = arith.constant 1.000000e+00 : f32
    %69 = vector.broadcast %cst_16 : f32 to vector<2x128xf32>
    %70 = arith.addf %69, %68 : vector<2x128xf32>
    %71 = arith.divf %69, %70 : vector<2x128xf32>
    %72 = vector.extract_strided_slice %71 {offsets = [0, 0], sizes = [2, 32], strides = [1, 1]} : vector<2x128xf32> to vector<2x32xf32>
    %73 = vector.extract_strided_slice %71 {offsets = [0, 32], sizes = [2, 32], strides = [1, 1]} : vector<2x128xf32> to vector<2x32xf32>
    %74 = vector.extract_strided_slice %71 {offsets = [0, 96], sizes = [2, 32], strides = [1, 1]} : vector<2x128xf32> to vector<2x32xf32>
    %75 = vector.extract_strided_slice %66 {offsets = [0, 64], sizes = [2, 32], strides = [1, 1]} : vector<2x128xf32> to vector<2x32xf32>
    %76 = math.tanh %75 : vector<2x32xf32>
    %77 = arith.mulf %73, %41 : vector<2x32xf32>
    %78 = arith.mulf %72, %76 : vector<2x32xf32>
    %79 = arith.addf %77, %78 : vector<2x32xf32>
    %80 = math.tanh %79 : vector<2x32xf32>
    %81 = arith.mulf %74, %80 : vector<2x32xf32>
    %c2_i32 = arith.constant 2 : i32
    %82 = arith.index_cast %c2_i32 : i32 to index
    %c0_17 = arith.constant 0 : index
    %c0_18 = arith.constant 0 : index
    %83 = vector.load %arg0[%82, %c0_17, %c0_18] : memref<8x2x128xf32, #tpu.memory_space<vmem>>, vector<1x2x128xf32>
    %84 = vector.shape_cast %83 : vector<1x2x128xf32> to vector<2x128xf32>
    %cst_19 = arith.constant dense<0.000000e+00> : vector<2x128xf32>
    %85 = tpu.matmul %63, %0, %cst_19 {dimension_numbers = #tpu.dot_dimension_numbers<[1], [0], [0], [1], [0, 0, 1, 1], [], []>} : vector<2x32xf32>, vector<32x128xf32>, vector<2x128xf32> -> vector<2x128xf32>
    %86 = arith.addf %84, %85 : vector<2x128xf32>
    %87 = arith.negf %86 : vector<2x128xf32>
    %88 = math.exp %87 : vector<2x128xf32>
    %cst_20 = arith.constant 1.000000e+00 : f32
    %89 = vector.broadcast %cst_20 : f32 to vector<2x128xf32>
    %90 = arith.addf %89, %88 : vector<2x128xf32>
    %91 = arith.divf %89, %90 : vector<2x128xf32>
    %92 = vector.extract_strided_slice %91 {offsets = [0, 0], sizes = [2, 32], strides = [1, 1]} : vector<2x128xf32> to vector<2x32xf32>
    %93 = vector.extract_strided_slice %91 {offsets = [0, 32], sizes = [2, 32], strides = [1, 1]} : vector<2x128xf32> to vector<2x32xf32>
    %94 = vector.extract_strided_slice %91 {offsets = [0, 96], sizes = [2, 32], strides = [1, 1]} : vector<2x128xf32> to vector<2x32xf32>
    %95 = vector.extract_strided_slice %86 {offsets = [0, 64], sizes = [2, 32], strides = [1, 1]} : vector<2x128xf32> to vector<2x32xf32>
    %96 = math.tanh %95 : vector<2x32xf32>
    %97 = arith.mulf %93, %61 : vector<2x32xf32>
    %98 = arith.mulf %92, %96 : vector<2x32xf32>
    %99 = arith.addf %97, %98 : vector<2x32xf32>
    %100 = math.tanh %99 : vector<2x32xf32>
    %101 = arith.mulf %94, %100 : vector<2x32xf32>
    %102 = tpu.concatenate %101, %81 in 1 : vector<2x32xf32>, vector<2x32xf32> -> vector<2x64xf32>
    %cst_21 = arith.constant dense<0.000000e+00> : vector<2x128xf32>
    %103 = tpu.matmul %102, %1, %cst_21 {dimension_numbers = #tpu.dot_dimension_numbers<[1], [0], [0], [1], [0, 0, 1, 1], [], []>} : vector<2x64xf32>, vector<64x128xf32>, vector<2x128xf32> -> vector<2x128xf32>
    %104 = arith.addf %103, %4 : vector<2x128xf32>
    %105 = arith.negf %104 : vector<2x128xf32>
    %106 = math.exp %105 : vector<2x128xf32>
    %cst_22 = arith.constant 1.000000e+00 : f32
    %107 = vector.broadcast %cst_22 : f32 to vector<2x128xf32>
    %108 = arith.addf %107, %106 : vector<2x128xf32>
    %109 = arith.divf %107, %108 : vector<2x128xf32>
    %110 = vector.extract_strided_slice %109 {offsets = [0, 0], sizes = [2, 32], strides = [1, 1]} : vector<2x128xf32> to vector<2x32xf32>
    %111 = vector.extract_strided_slice %109 {offsets = [0, 32], sizes = [2, 32], strides = [1, 1]} : vector<2x128xf32> to vector<2x32xf32>
    %112 = vector.extract_strided_slice %109 {offsets = [0, 96], sizes = [2, 32], strides = [1, 1]} : vector<2x128xf32> to vector<2x32xf32>
    %113 = vector.extract_strided_slice %104 {offsets = [0, 64], sizes = [2, 32], strides = [1, 1]} : vector<2x128xf32> to vector<2x32xf32>
    %114 = math.tanh %113 : vector<2x32xf32>
    %115 = arith.mulf %111, %79 : vector<2x32xf32>
    %116 = arith.mulf %110, %114 : vector<2x32xf32>
    %117 = arith.addf %115, %116 : vector<2x32xf32>
    %118 = math.tanh %117 : vector<2x32xf32>
    %119 = arith.mulf %112, %118 : vector<2x32xf32>
    %c3_i32 = arith.constant 3 : i32
    %120 = arith.index_cast %c3_i32 : i32 to index
    %c0_23 = arith.constant 0 : index
    %c0_24 = arith.constant 0 : index
    %121 = vector.load %arg0[%120, %c0_23, %c0_24] : memref<8x2x128xf32, #tpu.memory_space<vmem>>, vector<1x2x128xf32>
    %122 = vector.shape_cast %121 : vector<1x2x128xf32> to vector<2x128xf32>
    %cst_25 = arith.constant dense<0.000000e+00> : vector<2x128xf32>
    %123 = tpu.matmul %101, %0, %cst_25 {dimension_numbers = #tpu.dot_dimension_numbers<[1], [0], [0], [1], [0, 0, 1, 1], [], []>} : vector<2x32xf32>, vector<32x128xf32>, vector<2x128xf32> -> vector<2x128xf32>
    %124 = arith.addf %122, %123 : vector<2x128xf32>
    %125 = arith.negf %124 : vector<2x128xf32>
    %126 = math.exp %125 : vector<2x128xf32>
    %cst_26 = arith.constant 1.000000e+00 : f32
    %127 = vector.broadcast %cst_26 : f32 to vector<2x128xf32>
    %128 = arith.addf %127, %126 : vector<2x128xf32>
    %129 = arith.divf %127, %128 : vector<2x128xf32>
    %130 = vector.extract_strided_slice %129 {offsets = [0, 0], sizes = [2, 32], strides = [1, 1]} : vector<2x128xf32> to vector<2x32xf32>
    %131 = vector.extract_strided_slice %129 {offsets = [0, 32], sizes = [2, 32], strides = [1, 1]} : vector<2x128xf32> to vector<2x32xf32>
    %132 = vector.extract_strided_slice %129 {offsets = [0, 96], sizes = [2, 32], strides = [1, 1]} : vector<2x128xf32> to vector<2x32xf32>
    %133 = vector.extract_strided_slice %124 {offsets = [0, 64], sizes = [2, 32], strides = [1, 1]} : vector<2x128xf32> to vector<2x32xf32>
    %134 = math.tanh %133 : vector<2x32xf32>
    %135 = arith.mulf %131, %99 : vector<2x32xf32>
    %136 = arith.mulf %130, %134 : vector<2x32xf32>
    %137 = arith.addf %135, %136 : vector<2x32xf32>
    %138 = math.tanh %137 : vector<2x32xf32>
    %139 = arith.mulf %132, %138 : vector<2x32xf32>
    %140 = tpu.concatenate %139, %119 in 1 : vector<2x32xf32>, vector<2x32xf32> -> vector<2x64xf32>
    %cst_27 = arith.constant dense<0.000000e+00> : vector<2x128xf32>
    %141 = tpu.matmul %140, %1, %cst_27 {dimension_numbers = #tpu.dot_dimension_numbers<[1], [0], [0], [1], [0, 0, 1, 1], [], []>} : vector<2x64xf32>, vector<64x128xf32>, vector<2x128xf32> -> vector<2x128xf32>
    %142 = arith.addf %141, %4 : vector<2x128xf32>
    %143 = arith.negf %142 : vector<2x128xf32>
    %144 = math.exp %143 : vector<2x128xf32>
    %cst_28 = arith.constant 1.000000e+00 : f32
    %145 = vector.broadcast %cst_28 : f32 to vector<2x128xf32>
    %146 = arith.addf %145, %144 : vector<2x128xf32>
    %147 = arith.divf %145, %146 : vector<2x128xf32>
    %148 = vector.extract_strided_slice %147 {offsets = [0, 0], sizes = [2, 32], strides = [1, 1]} : vector<2x128xf32> to vector<2x32xf32>
    %149 = vector.extract_strided_slice %147 {offsets = [0, 32], sizes = [2, 32], strides = [1, 1]} : vector<2x128xf32> to vector<2x32xf32>
    %150 = vector.extract_strided_slice %147 {offsets = [0, 96], sizes = [2, 32], strides = [1, 1]} : vector<2x128xf32> to vector<2x32xf32>
    %151 = vector.extract_strided_slice %142 {offsets = [0, 64], sizes = [2, 32], strides = [1, 1]} : vector<2x128xf32> to vector<2x32xf32>
    %152 = math.tanh %151 : vector<2x32xf32>
    %153 = arith.mulf %149, %117 : vector<2x32xf32>
    %154 = arith.mulf %148, %152 : vector<2x32xf32>
    %155 = arith.addf %153, %154 : vector<2x32xf32>
    %156 = math.tanh %155 : vector<2x32xf32>
    %157 = arith.mulf %150, %156 : vector<2x32xf32>
    %c4_i32 = arith.constant 4 : i32
    %158 = arith.index_cast %c4_i32 : i32 to index
    %c0_29 = arith.constant 0 : index
    %c0_30 = arith.constant 0 : index
    %159 = vector.load %arg0[%158, %c0_29, %c0_30] : memref<8x2x128xf32, #tpu.memory_space<vmem>>, vector<1x2x128xf32>
    %160 = vector.shape_cast %159 : vector<1x2x128xf32> to vector<2x128xf32>
    %cst_31 = arith.constant dense<0.000000e+00> : vector<2x128xf32>
    %161 = tpu.matmul %139, %0, %cst_31 {dimension_numbers = #tpu.dot_dimension_numbers<[1], [0], [0], [1], [0, 0, 1, 1], [], []>} : vector<2x32xf32>, vector<32x128xf32>, vector<2x128xf32> -> vector<2x128xf32>
    %162 = arith.addf %160, %161 : vector<2x128xf32>
    %163 = arith.negf %162 : vector<2x128xf32>
    %164 = math.exp %163 : vector<2x128xf32>
    %cst_32 = arith.constant 1.000000e+00 : f32
    %165 = vector.broadcast %cst_32 : f32 to vector<2x128xf32>
    %166 = arith.addf %165, %164 : vector<2x128xf32>
    %167 = arith.divf %165, %166 : vector<2x128xf32>
    %168 = vector.extract_strided_slice %167 {offsets = [0, 0], sizes = [2, 32], strides = [1, 1]} : vector<2x128xf32> to vector<2x32xf32>
    %169 = vector.extract_strided_slice %167 {offsets = [0, 32], sizes = [2, 32], strides = [1, 1]} : vector<2x128xf32> to vector<2x32xf32>
    %170 = vector.extract_strided_slice %167 {offsets = [0, 96], sizes = [2, 32], strides = [1, 1]} : vector<2x128xf32> to vector<2x32xf32>
    %171 = vector.extract_strided_slice %162 {offsets = [0, 64], sizes = [2, 32], strides = [1, 1]} : vector<2x128xf32> to vector<2x32xf32>
    %172 = math.tanh %171 : vector<2x32xf32>
    %173 = arith.mulf %169, %137 : vector<2x32xf32>
    %174 = arith.mulf %168, %172 : vector<2x32xf32>
    %175 = arith.addf %173, %174 : vector<2x32xf32>
    %176 = math.tanh %175 : vector<2x32xf32>
    %177 = arith.mulf %170, %176 : vector<2x32xf32>
    %178 = tpu.concatenate %177, %157 in 1 : vector<2x32xf32>, vector<2x32xf32> -> vector<2x64xf32>
    %cst_33 = arith.constant dense<0.000000e+00> : vector<2x128xf32>
    %179 = tpu.matmul %178, %1, %cst_33 {dimension_numbers = #tpu.dot_dimension_numbers<[1], [0], [0], [1], [0, 0, 1, 1], [], []>} : vector<2x64xf32>, vector<64x128xf32>, vector<2x128xf32> -> vector<2x128xf32>
    %180 = arith.addf %179, %4 : vector<2x128xf32>
    %181 = arith.negf %180 : vector<2x128xf32>
    %182 = math.exp %181 : vector<2x128xf32>
    %cst_34 = arith.constant 1.000000e+00 : f32
    %183 = vector.broadcast %cst_34 : f32 to vector<2x128xf32>
    %184 = arith.addf %183, %182 : vector<2x128xf32>
    %185 = arith.divf %183, %184 : vector<2x128xf32>
    %186 = vector.extract_strided_slice %185 {offsets = [0, 0], sizes = [2, 32], strides = [1, 1]} : vector<2x128xf32> to vector<2x32xf32>
    %187 = vector.extract_strided_slice %185 {offsets = [0, 32], sizes = [2, 32], strides = [1, 1]} : vector<2x128xf32> to vector<2x32xf32>
    %188 = vector.extract_strided_slice %185 {offsets = [0, 96], sizes = [2, 32], strides = [1, 1]} : vector<2x128xf32> to vector<2x32xf32>
    %189 = vector.extract_strided_slice %180 {offsets = [0, 64], sizes = [2, 32], strides = [1, 1]} : vector<2x128xf32> to vector<2x32xf32>
    %190 = math.tanh %189 : vector<2x32xf32>
    %191 = arith.mulf %187, %155 : vector<2x32xf32>
    %192 = arith.mulf %186, %190 : vector<2x32xf32>
    %193 = arith.addf %191, %192 : vector<2x32xf32>
    %194 = math.tanh %193 : vector<2x32xf32>
    %195 = arith.mulf %188, %194 : vector<2x32xf32>
    %c5_i32 = arith.constant 5 : i32
    %196 = arith.index_cast %c5_i32 : i32 to index
    %c0_35 = arith.constant 0 : index
    %c0_36 = arith.constant 0 : index
    %197 = vector.load %arg0[%196, %c0_35, %c0_36] : memref<8x2x128xf32, #tpu.memory_space<vmem>>, vector<1x2x128xf32>
    %198 = vector.shape_cast %197 : vector<1x2x128xf32> to vector<2x128xf32>
    %cst_37 = arith.constant dense<0.000000e+00> : vector<2x128xf32>
    %199 = tpu.matmul %177, %0, %cst_37 {dimension_numbers = #tpu.dot_dimension_numbers<[1], [0], [0], [1], [0, 0, 1, 1], [], []>} : vector<2x32xf32>, vector<32x128xf32>, vector<2x128xf32> -> vector<2x128xf32>
    %200 = arith.addf %198, %199 : vector<2x128xf32>
    %201 = arith.negf %200 : vector<2x128xf32>
    %202 = math.exp %201 : vector<2x128xf32>
    %cst_38 = arith.constant 1.000000e+00 : f32
    %203 = vector.broadcast %cst_38 : f32 to vector<2x128xf32>
    %204 = arith.addf %203, %202 : vector<2x128xf32>
    %205 = arith.divf %203, %204 : vector<2x128xf32>
    %206 = vector.extract_strided_slice %205 {offsets = [0, 0], sizes = [2, 32], strides = [1, 1]} : vector<2x128xf32> to vector<2x32xf32>
    %207 = vector.extract_strided_slice %205 {offsets = [0, 32], sizes = [2, 32], strides = [1, 1]} : vector<2x128xf32> to vector<2x32xf32>
    %208 = vector.extract_strided_slice %205 {offsets = [0, 96], sizes = [2, 32], strides = [1, 1]} : vector<2x128xf32> to vector<2x32xf32>
    %209 = vector.extract_strided_slice %200 {offsets = [0, 64], sizes = [2, 32], strides = [1, 1]} : vector<2x128xf32> to vector<2x32xf32>
    %210 = math.tanh %209 : vector<2x32xf32>
    %211 = arith.mulf %207, %175 : vector<2x32xf32>
    %212 = arith.mulf %206, %210 : vector<2x32xf32>
    %213 = arith.addf %211, %212 : vector<2x32xf32>
    %214 = math.tanh %213 : vector<2x32xf32>
    %215 = arith.mulf %208, %214 : vector<2x32xf32>
    %216 = tpu.concatenate %215, %195 in 1 : vector<2x32xf32>, vector<2x32xf32> -> vector<2x64xf32>
    %cst_39 = arith.constant dense<0.000000e+00> : vector<2x128xf32>
    %217 = tpu.matmul %216, %1, %cst_39 {dimension_numbers = #tpu.dot_dimension_numbers<[1], [0], [0], [1], [0, 0, 1, 1], [], []>} : vector<2x64xf32>, vector<64x128xf32>, vector<2x128xf32> -> vector<2x128xf32>
    %218 = arith.addf %217, %4 : vector<2x128xf32>
    %219 = arith.negf %218 : vector<2x128xf32>
    %220 = math.exp %219 : vector<2x128xf32>
    %cst_40 = arith.constant 1.000000e+00 : f32
    %221 = vector.broadcast %cst_40 : f32 to vector<2x128xf32>
    %222 = arith.addf %221, %220 : vector<2x128xf32>
    %223 = arith.divf %221, %222 : vector<2x128xf32>
    %224 = vector.extract_strided_slice %223 {offsets = [0, 0], sizes = [2, 32], strides = [1, 1]} : vector<2x128xf32> to vector<2x32xf32>
    %225 = vector.extract_strided_slice %223 {offsets = [0, 32], sizes = [2, 32], strides = [1, 1]} : vector<2x128xf32> to vector<2x32xf32>
    %226 = vector.extract_strided_slice %223 {offsets = [0, 96], sizes = [2, 32], strides = [1, 1]} : vector<2x128xf32> to vector<2x32xf32>
    %227 = vector.extract_strided_slice %218 {offsets = [0, 64], sizes = [2, 32], strides = [1, 1]} : vector<2x128xf32> to vector<2x32xf32>
    %228 = math.tanh %227 : vector<2x32xf32>
    %229 = arith.mulf %225, %193 : vector<2x32xf32>
    %230 = arith.mulf %224, %228 : vector<2x32xf32>
    %231 = arith.addf %229, %230 : vector<2x32xf32>
    %232 = math.tanh %231 : vector<2x32xf32>
    %233 = arith.mulf %226, %232 : vector<2x32xf32>
    %c6_i32 = arith.constant 6 : i32
    %234 = arith.index_cast %c6_i32 : i32 to index
    %c0_41 = arith.constant 0 : index
    %c0_42 = arith.constant 0 : index
    %235 = vector.load %arg0[%234, %c0_41, %c0_42] : memref<8x2x128xf32, #tpu.memory_space<vmem>>, vector<1x2x128xf32>
    %236 = vector.shape_cast %235 : vector<1x2x128xf32> to vector<2x128xf32>
    %cst_43 = arith.constant dense<0.000000e+00> : vector<2x128xf32>
    %237 = tpu.matmul %215, %0, %cst_43 {dimension_numbers = #tpu.dot_dimension_numbers<[1], [0], [0], [1], [0, 0, 1, 1], [], []>} : vector<2x32xf32>, vector<32x128xf32>, vector<2x128xf32> -> vector<2x128xf32>
    %238 = arith.addf %236, %237 : vector<2x128xf32>
    %239 = arith.negf %238 : vector<2x128xf32>
    %240 = math.exp %239 : vector<2x128xf32>
    %cst_44 = arith.constant 1.000000e+00 : f32
    %241 = vector.broadcast %cst_44 : f32 to vector<2x128xf32>
    %242 = arith.addf %241, %240 : vector<2x128xf32>
    %243 = arith.divf %241, %242 : vector<2x128xf32>
    %244 = vector.extract_strided_slice %243 {offsets = [0, 0], sizes = [2, 32], strides = [1, 1]} : vector<2x128xf32> to vector<2x32xf32>
    %245 = vector.extract_strided_slice %243 {offsets = [0, 32], sizes = [2, 32], strides = [1, 1]} : vector<2x128xf32> to vector<2x32xf32>
    %246 = vector.extract_strided_slice %243 {offsets = [0, 96], sizes = [2, 32], strides = [1, 1]} : vector<2x128xf32> to vector<2x32xf32>
    %247 = vector.extract_strided_slice %238 {offsets = [0, 64], sizes = [2, 32], strides = [1, 1]} : vector<2x128xf32> to vector<2x32xf32>
    %248 = math.tanh %247 : vector<2x32xf32>
    %249 = arith.mulf %245, %213 : vector<2x32xf32>
    %250 = arith.mulf %244, %248 : vector<2x32xf32>
    %251 = arith.addf %249, %250 : vector<2x32xf32>
    %252 = math.tanh %251 : vector<2x32xf32>
    %253 = arith.mulf %246, %252 : vector<2x32xf32>
    %254 = tpu.concatenate %253, %233 in 1 : vector<2x32xf32>, vector<2x32xf32> -> vector<2x64xf32>
    %cst_45 = arith.constant dense<0.000000e+00> : vector<2x128xf32>
    %255 = tpu.matmul %254, %1, %cst_45 {dimension_numbers = #tpu.dot_dimension_numbers<[1], [0], [0], [1], [0, 0, 1, 1], [], []>} : vector<2x64xf32>, vector<64x128xf32>, vector<2x128xf32> -> vector<2x128xf32>
    %256 = arith.addf %255, %4 : vector<2x128xf32>
    %257 = arith.negf %256 : vector<2x128xf32>
    %258 = math.exp %257 : vector<2x128xf32>
    %cst_46 = arith.constant 1.000000e+00 : f32
    %259 = vector.broadcast %cst_46 : f32 to vector<2x128xf32>
    %260 = arith.addf %259, %258 : vector<2x128xf32>
    %261 = arith.divf %259, %260 : vector<2x128xf32>
    %262 = vector.extract_strided_slice %261 {offsets = [0, 0], sizes = [2, 32], strides = [1, 1]} : vector<2x128xf32> to vector<2x32xf32>
    %263 = vector.extract_strided_slice %261 {offsets = [0, 32], sizes = [2, 32], strides = [1, 1]} : vector<2x128xf32> to vector<2x32xf32>
    %264 = vector.extract_strided_slice %261 {offsets = [0, 96], sizes = [2, 32], strides = [1, 1]} : vector<2x128xf32> to vector<2x32xf32>
    %265 = vector.extract_strided_slice %256 {offsets = [0, 64], sizes = [2, 32], strides = [1, 1]} : vector<2x128xf32> to vector<2x32xf32>
    %266 = math.tanh %265 : vector<2x32xf32>
    %267 = arith.mulf %263, %231 : vector<2x32xf32>
    %268 = arith.mulf %262, %266 : vector<2x32xf32>
    %269 = arith.addf %267, %268 : vector<2x32xf32>
    %270 = math.tanh %269 : vector<2x32xf32>
    %271 = arith.mulf %264, %270 : vector<2x32xf32>
    %c7_i32 = arith.constant 7 : i32
    %272 = arith.index_cast %c7_i32 : i32 to index
    %c0_47 = arith.constant 0 : index
    %c0_48 = arith.constant 0 : index
    %273 = vector.load %arg0[%272, %c0_47, %c0_48] : memref<8x2x128xf32, #tpu.memory_space<vmem>>, vector<1x2x128xf32>
    %274 = vector.shape_cast %273 : vector<1x2x128xf32> to vector<2x128xf32>
    %cst_49 = arith.constant dense<0.000000e+00> : vector<2x128xf32>
    %275 = tpu.matmul %253, %0, %cst_49 {dimension_numbers = #tpu.dot_dimension_numbers<[1], [0], [0], [1], [0, 0, 1, 1], [], []>} : vector<2x32xf32>, vector<32x128xf32>, vector<2x128xf32> -> vector<2x128xf32>
    %276 = arith.addf %274, %275 : vector<2x128xf32>
    %277 = arith.negf %276 : vector<2x128xf32>
    %278 = math.exp %277 : vector<2x128xf32>
    %cst_50 = arith.constant 1.000000e+00 : f32
    %279 = vector.broadcast %cst_50 : f32 to vector<2x128xf32>
    %280 = arith.addf %279, %278 : vector<2x128xf32>
    %281 = arith.divf %279, %280 : vector<2x128xf32>
    %282 = vector.extract_strided_slice %281 {offsets = [0, 0], sizes = [2, 32], strides = [1, 1]} : vector<2x128xf32> to vector<2x32xf32>
    %283 = vector.extract_strided_slice %281 {offsets = [0, 32], sizes = [2, 32], strides = [1, 1]} : vector<2x128xf32> to vector<2x32xf32>
    %284 = vector.extract_strided_slice %281 {offsets = [0, 96], sizes = [2, 32], strides = [1, 1]} : vector<2x128xf32> to vector<2x32xf32>
    %285 = vector.extract_strided_slice %276 {offsets = [0, 64], sizes = [2, 32], strides = [1, 1]} : vector<2x128xf32> to vector<2x32xf32>
    %286 = math.tanh %285 : vector<2x32xf32>
    %287 = arith.mulf %283, %251 : vector<2x32xf32>
    %288 = arith.mulf %282, %286 : vector<2x32xf32>
    %289 = arith.addf %287, %288 : vector<2x32xf32>
    %290 = math.tanh %289 : vector<2x32xf32>
    %291 = arith.mulf %284, %290 : vector<2x32xf32>
    %292 = tpu.concatenate %291, %271 in 1 : vector<2x32xf32>, vector<2x32xf32> -> vector<2x64xf32>
    %cst_51 = arith.constant dense<0.000000e+00> : vector<2x128xf32>
    %293 = tpu.matmul %292, %1, %cst_51 {dimension_numbers = #tpu.dot_dimension_numbers<[1], [0], [0], [1], [0, 0, 1, 1], [], []>} : vector<2x64xf32>, vector<64x128xf32>, vector<2x128xf32> -> vector<2x128xf32>
    %294 = arith.addf %293, %4 : vector<2x128xf32>
    %295 = arith.negf %294 : vector<2x128xf32>
    %296 = math.exp %295 : vector<2x128xf32>
    %cst_52 = arith.constant 1.000000e+00 : f32
    %297 = vector.broadcast %cst_52 : f32 to vector<2x128xf32>
    %298 = arith.addf %297, %296 : vector<2x128xf32>
    %299 = arith.divf %297, %298 : vector<2x128xf32>
    %300 = vector.extract_strided_slice %299 {offsets = [0, 0], sizes = [2, 32], strides = [1, 1]} : vector<2x128xf32> to vector<2x32xf32>
    %301 = vector.extract_strided_slice %299 {offsets = [0, 32], sizes = [2, 32], strides = [1, 1]} : vector<2x128xf32> to vector<2x32xf32>
    %302 = vector.extract_strided_slice %299 {offsets = [0, 96], sizes = [2, 32], strides = [1, 1]} : vector<2x128xf32> to vector<2x32xf32>
    %303 = vector.extract_strided_slice %294 {offsets = [0, 64], sizes = [2, 32], strides = [1, 1]} : vector<2x128xf32> to vector<2x32xf32>
    %304 = math.tanh %303 : vector<2x32xf32>
    %305 = arith.mulf %301, %269 : vector<2x32xf32>
    %306 = arith.mulf %300, %304 : vector<2x32xf32>
    %307 = arith.addf %305, %306 : vector<2x32xf32>
    %308 = math.tanh %307 : vector<2x32xf32>
    %309 = arith.mulf %302, %308 : vector<2x32xf32>
    %c8_i32 = arith.constant 8 : i32
    %c0_53 = arith.constant 0 : index
    %c0_54 = arith.constant 0 : index
    %310 = vector.load %arg4[%c0_53, %c0_54] : memref<32x128xf32, #tpu.memory_space<vmem>>, vector<32x128xf32>
    %cst_55 = arith.constant dense<0.000000e+00> : vector<2x128xf32>
    %311 = tpu.matmul %309, %310, %cst_55 {dimension_numbers = #tpu.dot_dimension_numbers<[1], [0], [0], [1], [0, 0, 1, 1], [], []>} : vector<2x32xf32>, vector<32x128xf32>, vector<2x128xf32> -> vector<2x128xf32>
    %c0_56 = arith.constant 0 : index
    %c0_57 = arith.constant 0 : index
    %312 = vector.load %arg5[%c0_56, %c0_57] : memref<1x128xf32, #tpu.memory_space<vmem>>, vector<1x128xf32>
    %313 = vector.broadcast %312 : vector<1x128xf32> to vector<2x128xf32>
    %314 = arith.addf %311, %313 : vector<2x128xf32>
    %c0_58 = arith.constant 0 : index
    %c0_59 = arith.constant 0 : index
    %315 = vector.load %arg6[%c0_58, %c0_59] : memref<2x128xf32, #tpu.memory_space<vmem>>, vector<2x128xf32>
    tpu.vector_store %arg6[%c0_58, %c0_59], %314 {strides = array<i32>} : memref<2x128xf32, #tpu.memory_space<vmem>>, vector<2x128xf32>,
    return
  }
}

</mosaic_0001>

<llo_original>
// kernel: net_forward.1
$region0: #{net_forward.1}
  #allocation0 [shape = 'u32[]', space=smem, size = 0x4, offset = 0x4, fixed_abs, tag = 'smem constant byte address 0x4 - core index']
  #allocation1 [shape = 'u32[144,128]{1,0:T(1,128)}', space=vmem, size = 0x12000, scoped, tag = 'internal scratch']
  %s0 = inlined_call_operand.vmem [shape: f32[8,2,128], index: 0, kind: input, shape index: {}]
  %s1 = inlined_call_operand.vmem [shape: f32[32,128], index: 1, kind: input, shape index: {}]
  %s2 = inlined_call_operand.vmem [shape: f32[64,128], index: 2, kind: input, shape index: {}]
  %s3 = inlined_call_operand.vmem [shape: f32[1,128], index: 3, kind: input, shape index: {}]
  %s4 = inlined_call_operand.vmem [shape: f32[32,128], index: 4, kind: input, shape index: {}]
  %s5 = inlined_call_operand.vmem [shape: f32[1,128], index: 5, kind: input, shape index: {}]
  %s6 = inlined_call_operand.hbm [shape: f32[2,128], index: 6, kind: output, shape index: {}]
  %s7 = sld [smem:[#allocation0]]
  $region34: #{net_forward.1} parent=0
    _
  %s9 = ssub.s32 1, %s7
  %s10 = scalar_select 0, %s9, %s7
  $region1: #{net_forward.1} parent=0
    #allocation2 [shape = 'u8[1024]{0}', space=vmem, size = 0x400, scoped, tag = 'output window, operand 0, single buffered']
    #allocation3 [shape = 's32[1]{0}', space=sflag, size = 0x4, scoped, tag = 'scoped memory for net_forward.1']
    %11 = vsyncpa [#allocation3], 0
    // Predicated region
    $region2: #{net_forward.1} parent=1 // pred_check
      _
    $region3: #{net_forward.1} parent=1 // pred_check_branch
      %13 = sbr.rel (0) target = $region5
    $region4: #{net_forward.1} parent=1 // pred_region
      _
    $region5: #{net_forward.1} parent=1 // pred_fallthru
      _
    // Predicated region
    $region6: #{net_forward.1} parent=1 // pred_check
      _
    $region7: #{net_forward.1} parent=1 // pred_check_branch
      %15 = sbr.rel (0) target = $region9
    $region8: #{net_forward.1} parent=1 // pred_region
      _
    $region9: #{net_forward.1} parent=1 // pred_fallthru
      _
    // Predicated region
    $region10: #{net_forward.1} parent=1 // pred_check
      _
    $region11: #{net_forward.1} parent=1 // pred_check_branch
      %17 = sbr.rel (0) target = $region13
    $region12: #{net_forward.1} parent=1 // pred_region
      _
    $region13: #{net_forward.1} parent=1 // pred_fallthru
      _
    // Predicated region
    $region14: #{net_forward.1} parent=1 // pred_check
      _
    $region15: #{net_forward.1} parent=1 // pred_check_branch
      %19 = sbr.rel (0) target = $region17
    $region16: #{net_forward.1} parent=1 // pred_region
      _
    $region17: #{net_forward.1} parent=1 // pred_fallthru
      _
    // Predicated region
    $region18: #{net_forward.1} parent=1 // pred_check
      _
    $region19: #{net_forward.1} parent=1 // pred_check_branch
      %21 = sbr.rel (0) target = $region21
    $region20: #{net_forward.1} parent=1 // pred_region
      _
    $region21: #{net_forward.1} parent=1 // pred_fallthru
      _
    // Predicated region
    $region22: #{net_forward.1} parent=1 // pred_check
      _
    $region23: #{net_forward.1} parent=1 // pred_check_branch
      %23 = sbr.rel (0) target = $region25
    $region24: #{net_forward.1} parent=1 // pred_region
      _
    $region25: #{net_forward.1} parent=1 // pred_fallthru
      _
    %v24 = vld [vmem:[%s1] sm:$0xff]
    %v25 = vld [vmem:[%s1 + $0x8] sm:$0xff]
    %v26 = vld [vmem:[%s1 + $0x10] sm:$0xff]
    %v27 = vld [vmem:[%s1 + $0x18] sm:$0xff]
    %v28 = vld [vmem:[%s2] sm:$0xff]
    %v29 = vld [vmem:[%s2 + $0x8] sm:$0xff]
    %v30 = vld [vmem:[%s2 + $0x10] sm:$0xff]
    %v31 = vld [vmem:[%s2 + $0x18] sm:$0xff]
    %v32 = vld [vmem:[%s2 + $0x20] sm:$0xff]
    %v33 = vld [vmem:[%s2 + $0x28] sm:$0xff]
    %v34 = vld [vmem:[%s2 + $0x30] sm:$0xff]
    %v35 = vld [vmem:[%s2 + $0x38] sm:$0xff]
    %v36 = vld [vmem:[%s3] sm:$0x1]
    %v38 = vlaneseq
    %v39 = vshrl.u32 %v38, 7
    %v40 = vsub.s32 0, %v39
    %v41 = vrot.slane %v36, %v40
    %v43 = vld [vmem:[%s0] sm:$0x3]
    %vm44 = vcmask 261120
    %v46 = vsel %vm44, 0.0, 0
    %48 = vmatprep.subr.mxu0 0.0
    %49 = vmatpush1.msra.mxu0 %v24
    %50 = vmatprep.subr.mxu0 0.0
    %51 = vmatpush1.msra.mxu0 %v25
    %52 = vmatprep.subr.mxu0 0.0
    %53 = vmatpush1.msra.mxu0 %v26
    %54 = vmatprep.subr.mxu0 0.0
    %55 = vmatpush1.msra.mxu0 %v27
    %56 = vmatprep.subr.mxu0 0.0
    %57 = vmatpush1.msra.mxu0 0.0
    %58 = vmatprep.subr.mxu0 0.0
    %59 = vmatpush1.msra.mxu0 0.0
    %60 = vmatprep.subr.mxu0 0.0
    %61 = vmatpush1.msra.mxu0 0.0
    %62 = vmatprep.subr.mxu0 0.0
    %63 = vmatpush1.msra.mxu0 0.0
    %64 = vmatprep.subr.mxu0 0.0
    %65 = vmatpush1.msra.mxu0 0.0
    %66 = vmatprep.subr.mxu0 0.0
    %67 = vmatpush1.msra.mxu0 0.0
    %68 = vmatprep.subr.mxu0 0.0
    %69 = vmatpush1.msra.mxu0 0.0
    %70 = vmatprep.subr.mxu0 0.0
    %71 = vmatpush1.msra.mxu0 0.0
    %72 = vmatprep.subr.mxu0 0.0
    %73 = vmatpush1.msra.mxu0 0.0
    %74 = vmatprep.subr.mxu0 0.0
    %75 = vmatpush1.msra.mxu0 0.0
    %76 = vmatprep.subr.mxu0 0.0
    %77 = vmatpush1.msra.mxu0 0.0
    %78 = vmatprep.subr.mxu0 0.0
    %79 = vmatpush1.msra.mxu0 0.0
    %80 = vmatprep.subr.mxu0 0.0
    %81 = vmatpush1.msra.mxu0 0.0
    %82 = vmatprep.subr.mxu0 0.0
    %83 = vmatpush1.msra.mxu0 0.0
    %84 = vmatprep.subr.mxu0 0.0
    %85 = vmatpush1.msra.mxu0 0.0
    %86 = vmatprep.subr.mxu0 0.0
    %87 = vmatpush1.msra.mxu0 0.0
    %88 = vmatprep.subr.mxu0 0.0
    %89 = vmatpush1.msra.mxu0 0.0
    %90 = vmatprep.subr.mxu0 0.0
    %91 = vmatpush1.msra.mxu0 0.0
    %92 = vmatprep.subr.mxu0 0.0
    %93 = vmatpush1.msra.mxu0 0.0
    %94 = vmatprep.subr.mxu0 0.0
    %95 = vmatpush1.msra.mxu0 0.0
    %96 = vmatprep.subr.mxu0 0.0
    %97 = vmatpush1.msra.mxu0 0.0
    %98 = vmatprep.subr.mxu0 0.0
    %99 = vmatpush1.msra.mxu0 0.0
    %100 = vmatprep.subr.mxu0 0.0
    %101 = vmatpush1.msra.mxu0 0.0
    %102 = vmatprep.subr.mxu0 0.0
    %103 = vmatpush1.msra.mxu0 0.0
    %104 = vmatprep.subr.mxu0 0.0
    %105 = vmatpush1.msra.mxu0 0.0
    %106 = vmatprep.subr.mxu0 0.0
    %107 = vmatpush1.msra.mxu0 0.0
    %108 = vmatprep.subr.mxu0 0.0
    %109 = vmatpush1.msra.mxu0 0.0
    %110 = vmatprep.subr.mxu0 0.0
    %111 = vmatpush1.msra.mxu0 0.0
    %112 = vmatprep.mubr.f32.mxu0 0.0
    %113 = vmatmul.mubr.f32.gmra.mrb[0].mxu0 %v46
    %v114 = vpop.f32.mrb[0].mxu0
    %v115 = vadd.f32 0.0, %v114
    %v116 = vpop.f32.mrb[0].mxu0
    %117 = vdwg.mxu0
    %v118 = vadd.f32 %v43, %v115
    %v119 = vxor.u32 %v118, 2147483648
    %v120 = vmul.f32 %v119, 1.442695
    %v121 = vpow.pop %v120
    %v122 = vadd.f32 %v121, 1.0
    %v123 = vrcp.pop %v122
    %v124 = vmul.f32 1.0, %v123
    %v125 = vtanh.pop %v118
    %v126 = vmul.f32 %v124, 0.0
    %128 = vrot.lane.b32.xlu0 %v125, 64
    %v129 = vpop.permute.xlu0 %128
    %v131 = vmul.f32 %v124, %v129
    %133 = vrot.lane.b32.xlu0 %v131, 32
    %v134 = vpop.permute.xlu0 %133
    %v136 = vadd.f32 %v126, %v134
    %v137 = vtanh.pop %v136
    %139 = vrot.lane.b32.xlu0 %v137, 64
    %v140 = vpop.permute.xlu0 %139
    %v142 = vmul.f32 %v124, %v140
    %144 = vrot.lane.b32.xlu0 %v142, 32
    %v145 = vpop.permute.xlu0 %144
    %v147 = vsel %vm44, %v145, 0.0
    %vm148 = vcmask 523264
    %v150 = vsel %vm148, %v147, 0
    %152 = vmatprep.subr.mxu0 0.0
    %153 = vmatpush1.msra.mxu0 %v28
    %154 = vmatprep.subr.mxu0 0.0
    %155 = vmatpush1.msra.mxu0 %v29
    %156 = vmatprep.subr.mxu0 0.0
    %157 = vmatpush1.msra.mxu0 %v30
    %158 = vmatprep.subr.mxu0 0.0
    %159 = vmatpush1.msra.mxu0 %v31
    %160 = vmatprep.subr.mxu0 0.0
    %161 = vmatpush1.msra.mxu0 %v32
    %162 = vmatprep.subr.mxu0 0.0
    %163 = vmatpush1.msra.mxu0 %v33
    %164 = vmatprep.subr.mxu0 0.0
    %165 = vmatpush1.msra.mxu0 %v34
    %166 = vmatprep.subr.mxu0 0.0
    %167 = vmatpush1.msra.mxu0 %v35
    %168 = vmatprep.subr.mxu0 0.0
    %169 = vmatpush1.msra.mxu0 0.0
    %170 = vmatprep.subr.mxu0 0.0
    %171 = vmatpush1.msra.mxu0 0.0
    %172 = vmatprep.subr.mxu0 0.0
    %173 = vmatpush1.msra.mxu0 0.0
    %174 = vmatprep.subr.mxu0 0.0
    %175 = vmatpush1.msra.mxu0 0.0
    %176 = vmatprep.subr.mxu0 0.0
    %177 = vmatpush1.msra.mxu0 0.0
    %178 = vmatprep.subr.mxu0 0.0
    %179 = vmatpush1.msra.mxu0 0.0
    %180 = vmatprep.subr.mxu0 0.0
    %181 = vmatpush1.msra.mxu0 0.0
    %182 = vmatprep.subr.mxu0 0.0
    %183 = vmatpush1.msra.mxu0 0.0
    %184 = vmatprep.subr.mxu0 0.0
    %185 = vmatpush1.msra.mxu0 0.0
    %186 = vmatprep.subr.mxu0 0.0
    %187 = vmatpush1.msra.mxu0 0.0
    %188 = vmatprep.subr.mxu0 0.0
    %189 = vmatpush1.msra.mxu0 0.0
    %190 = vmatprep.subr.mxu0 0.0
    %191 = vmatpush1.msra.mxu0 0.0
    %192 = vmatprep.subr.mxu0 0.0
    %193 = vmatpush1.msra.mxu0 0.0
    %194 = vmatprep.subr.mxu0 0.0
    %195 = vmatpush1.msra.mxu0 0.0
    %196 = vmatprep.subr.mxu0 0.0
    %197 = vmatpush1.msra.mxu0 0.0
    %198 = vmatprep.subr.mxu0 0.0
    %199 = vmatpush1.msra.mxu0 0.0
    %200 = vmatprep.subr.mxu0 0.0
    %201 = vmatpush1.msra.mxu0 0.0
    %202 = vmatprep.subr.mxu0 0.0
    %203 = vmatpush1.msra.mxu0 0.0
    %204 = vmatprep.subr.mxu0 0.0
    %205 = vmatpush1.msra.mxu0 0.0
    %206 = vmatprep.subr.mxu0 0.0
    %207 = vmatpush1.msra.mxu0 0.0
    %208 = vmatprep.subr.mxu0 0.0
    %209 = vmatpush1.msra.mxu0 0.0
    %210 = vmatprep.subr.mxu0 0.0
    %211 = vmatpush1.msra.mxu0 0.0
    %212 = vmatprep.subr.mxu0 0.0
    %213 = vmatpush1.msra.mxu0 0.0
    %214 = vmatprep.subr.mxu0 0.0
    %215 = vmatpush1.msra.mxu0 0.0
    %216 = vmatprep.mubr.f32.mxu0 0.0
    %217 = vmatmul.mubr.f32.gmra.mrb[0].mxu0 %v150
    %v218 = vpop.f32.mrb[0].mxu0
    %v219 = vadd.f32 %v41, %v218
    %v220 = vpop.f32.mrb[0].mxu0
    %221 = vdwg.mxu0
    %v222 = vxor.u32 %v219, 2147483648
    %v223 = vmul.f32 %v222, 1.442695
    %v224 = vpow.pop %v223
    %v225 = vadd.f32 %v224, 1.0
    %v226 = vrcp.pop %v225
    %v227 = vmul.f32 1.0, %v226
    %v228 = vtanh.pop %v219
    %v229 = vmul.f32 %v227, 0.0
    %231 = vrot.lane.b32.xlu0 %v228, 64
    %v232 = vpop.permute.xlu0 %231
    %v234 = vmul.f32 %v227, %v232
    %236 = vrot.lane.b32.xlu0 %v234, 32
    %v237 = vpop.permute.xlu0 %236
    %v239 = vadd.f32 %v229, %v237
    %v240 = vtanh.pop %v239
    %242 = vrot.lane.b32.xlu0 %v240, 64
    %v243 = vpop.permute.xlu0 %242
    %v245 = vmul.f32 %v227, %v243
    %s246 = scalar_lea.vmem %s0, 2
    %v247 = vld [vmem:[%s246] sm:$0x3]
    %v248 = vsel %vm44, %v145, 0
    %250 = vmatprep.subr.mxu0 0.0
    %251 = vmatpush1.msra.mxu0 %v24
    %252 = vmatprep.subr.mxu0 0.0
    %253 = vmatpush1.msra.mxu0 %v25
    %254 = vmatprep.subr.mxu0 0.0
    %255 = vmatpush1.msra.mxu0 %v26
    %256 = vmatprep.subr.mxu0 0.0
    %257 = vmatpush1.msra.mxu0 %v27
    %258 = vmatprep.subr.mxu0 0.0
    %259 = vmatpush1.msra.mxu0 0.0
    %260 = vmatprep.subr.mxu0 0.0
    %261 = vmatpush1.msra.mxu0 0.0
    %262 = vmatprep.subr.mxu0 0.0
    %263 = vmatpush1.msra.mxu0 0.0
    %264 = vmatprep.subr.mxu0 0.0
    %265 = vmatpush1.msra.mxu0 0.0
    %266 = vmatprep.subr.mxu0 0.0
    %267 = vmatpush1.msra.mxu0 0.0
    %268 = vmatprep.subr.mxu0 0.0
    %269 = vmatpush1.msra.mxu0 0.0
    %270 = vmatprep.subr.mxu0 0.0
    %271 = vmatpush1.msra.mxu0 0.0
    %272 = vmatprep.subr.mxu0 0.0
    %273 = vmatpush1.msra.mxu0 0.0
    %274 = vmatprep.subr.mxu0 0.0
    %275 = vmatpush1.msra.mxu0 0.0
    %276 = vmatprep.subr.mxu0 0.0
    %277 = vmatpush1.msra.mxu0 0.0
    %278 = vmatprep.subr.mxu0 0.0
    %279 = vmatpush1.msra.mxu0 0.0
    %280 = vmatprep.subr.mxu0 0.0
    %281 = vmatpush1.msra.mxu0 0.0
    %282 = vmatprep.subr.mxu0 0.0
    %283 = vmatpush1.msra.mxu0 0.0
    %284 = vmatprep.subr.mxu0 0.0
    %285 = vmatpush1.msra.mxu0 0.0
    %286 = vmatprep.subr.mxu0 0.0
    %287 = vmatpush1.msra.mxu0 0.0
    %288 = vmatprep.subr.mxu0 0.0
    %289 = vmatpush1.msra.mxu0 0.0
    %290 = vmatprep.subr.mxu0 0.0
    %291 = vmatpush1.msra.mxu0 0.0
    %292 = vmatprep.subr.mxu0 0.0
    %293 = vmatpush1.msra.mxu0 0.0
    %294 = vmatprep.subr.mxu0 0.0
    %295 = vmatpush1.msra.mxu0 0.0
    %296 = vmatprep.subr.mxu0 0.0
    %297 = vmatpush1.msra.mxu0 0.0
    %298 = vmatprep.subr.mxu0 0.0
    %299 = vmatpush1.msra.mxu0 0.0
    %300 = vmatprep.subr.mxu0 0.0
    %301 = vmatpush1.msra.mxu0 0.0
    %302 = vmatprep.subr.mxu0 0.0
    %303 = vmatpush1.msra.mxu0 0.0
    %304 = vmatprep.subr.mxu0 0.0
    %305 = vmatpush1.msra.mxu0 0.0
    %306 = vmatprep.subr.mxu0 0.0
    %307 = vmatpush1.msra.mxu0 0.0
    %308 = vmatprep.subr.mxu0 0.0
    %309 = vmatpush1.msra.mxu0 0.0
    %310 = vmatprep.subr.mxu0 0.0
    %311 = vmatpush1.msra.mxu0 0.0
    %312 = vmatprep.subr.mxu0 0.0
    %313 = vmatpush1.msra.mxu0 0.0
    %314 = vmatprep.mubr.f32.mxu0 0.0
    %315 = vmatmul.mubr.f32.gmra.mrb[0].mxu0 %v248
    %v316 = vpop.f32.mrb[0].mxu0
    %v317 = vadd.f32 0.0, %v316
    %v318 = vpop.f32.mrb[0].mxu0
    %319 = vdwg.mxu0
    %v320 = vadd.f32 %v247, %v317
    %v321 = vxor.u32 %v320, 2147483648
    %v322 = vmul.f32 %v321, 1.442695
    %v323 = vpow.pop %v322
    %v324 = vadd.f32 %v323, 1.0
    %v325 = vrcp.pop %v324
    %v326 = vmul.f32 1.0, %v325
    %v327 = vtanh.pop %v320
    %v328 = vmul.f32 %v326, %v136
    %330 = vrot.lane.b32.xlu0 %v327, 64
    %v331 = vpop.permute.xlu0 %330
    %v333 = vmul.f32 %v326, %v331
    %335 = vrot.lane.b32.xlu0 %v333, 32
    %v336 = vpop.permute.xlu0 %335
    %v338 = vadd.f32 %v328, %v336
    %v339 = vtanh.pop %v338
    %341 = vrot.lane.b32.xlu0 %v339, 64
    %v342 = vpop.permute.xlu0 %341
    %v344 = vmul.f32 %v326, %v342
    %346 = vrot.lane.b32.xlu0 %v344, 32
    %v347 = vpop.permute.xlu0 %346
    %350 = vrot.lane.b32.xlu0 %v245, 64
    %v351 = vpop.permute.xlu0 %350
    %v353 = vsel %vm44, %v347, %v351
    %v355 = vsel %vm148, %v353, 0
    %357 = vmatprep.subr.mxu0 0.0
    %358 = vmatpush1.msra.mxu0 %v28
    %359 = vmatprep.subr.mxu0 0.0
    %360 = vmatpush1.msra.mxu0 %v29
    %361 = vmatprep.subr.mxu0 0.0
    %362 = vmatpush1.msra.mxu0 %v30
    %363 = vmatprep.subr.mxu0 0.0
    %364 = vmatpush1.msra.mxu0 %v31
    %365 = vmatprep.subr.mxu0 0.0
    %366 = vmatpush1.msra.mxu0 %v32
    %367 = vmatprep.subr.mxu0 0.0
    %368 = vmatpush1.msra.mxu0 %v33
    %369 = vmatprep.subr.mxu0 0.0
    %370 = vmatpush1.msra.mxu0 %v34
    %371 = vmatprep.subr.mxu0 0.0
    %372 = vmatpush1.msra.mxu0 %v35
    %373 = vmatprep.subr.mxu0 0.0
    %374 = vmatpush1.msra.mxu0 0.0
    %375 = vmatprep.subr.mxu0 0.0
    %376 = vmatpush1.msra.mxu0 0.0
    %377 = vmatprep.subr.mxu0 0.0
    %378 = vmatpush1.msra.mxu0 0.0
    %379 = vmatprep.subr.mxu0 0.0
    %380 = vmatpush1.msra.mxu0 0.0
    %381 = vmatprep.subr.mxu0 0.0
    %382 = vmatpush1.msra.mxu0 0.0
    %383 = vmatprep.subr.mxu0 0.0
    %384 = vmatpush1.msra.mxu0 0.0
    %385 = vmatprep.subr.mxu0 0.0
    %386 = vmatpush1.msra.mxu0 0.0
    %387 = vmatprep.subr.mxu0 0.0
    %388 = vmatpush1.msra.mxu0 0.0
    %389 = vmatprep.subr.mxu0 0.0
    %390 = vmatpush1.msra.mxu0 0.0
    %391 = vmatprep.subr.mxu0 0.0
    %392 = vmatpush1.msra.mxu0 0.0
    %393 = vmatprep.subr.mxu0 0.0
    %394 = vmatpush1.msra.mxu0 0.0
    %395 = vmatprep.subr.mxu0 0.0
    %396 = vmatpush1.msra.mxu0 0.0
    %397 = vmatprep.subr.mxu0 0.0
    %398 = vmatpush1.msra.mxu0 0.0
    %399 = vmatprep.subr.mxu0 0.0
    %400 = vmatpush1.msra.mxu0 0.0
    %401 = vmatprep.subr.mxu0 0.0
    %402 = vmatpush1.msra.mxu0 0.0
    %403 = vmatprep.subr.mxu0 0.0
    %404 = vmatpush1.msra.mxu0 0.0
    %405 = vmatprep.subr.mxu0 0.0
    %406 = vmatpush1.msra.mxu0 0.0
    %407 = vmatprep.subr.mxu0 0.0
    %408 = vmatpush1.msra.mxu0 0.0
    %409 = vmatprep.subr.mxu0 0.0
    %410 = vmatpush1.msra.mxu0 0.0
    %411 = vmatprep.subr.mxu0 0.0
    %412 = vmatpush1.msra.mxu0 0.0
    %413 = vmatprep.subr.mxu0 0.0
    %414 = vmatpush1.msra.mxu0 0.0
    %415 = vmatprep.subr.mxu0 0.0
    %416 = vmatpush1.msra.mxu0 0.0
    %417 = vmatprep.subr.mxu0 0.0
    %418 = vmatpush1.msra.mxu0 0.0
    %419 = vmatprep.subr.mxu0 0.0
    %420 = vmatpush1.msra.mxu0 0.0
    %421 = vmatprep.mubr.f32.mxu0 0.0
    %422 = vmatmul.mubr.f32.gmra.mrb[0].mxu0 %v355
    %v423 = vpop.f32.mrb[0].mxu0
    %v424 = vadd.f32 %v41, %v423
    %v425 = vpop.f32.mrb[0].mxu0
    %426 = vdwg.mxu0
    %v427 = vxor.u32 %v424, 2147483648
    %v428 = vmul.f32 %v427, 1.442695
    %v429 = vpow.pop %v428
    %v430 = vadd.f32 %v429, 1.0
    %v431 = vrcp.pop %v430
    %v432 = vmul.f32 1.0, %v431
    %v433 = vtanh.pop %v424
    %v434 = vmul.f32 %v432, %v239
    %436 = vrot.lane.b32.xlu0 %v433, 64
    %v437 = vpop.permute.xlu0 %436
    %v439 = vmul.f32 %v432, %v437
    %441 = vrot.lane.b32.xlu0 %v439, 32
    %v442 = vpop.permute.xlu0 %441
    %v444 = vadd.f32 %v434, %v442
    %v445 = vtanh.pop %v444
    %447 = vrot.lane.b32.xlu0 %v445, 64
    %v448 = vpop.permute.xlu0 %447
    %v450 = vmul.f32 %v432, %v448
    %s451 = scalar_lea.vmem %s0, 4
    %v452 = vld [vmem:[%s451] sm:$0x3]
    %v453 = vsel %vm44, %v347, 0
    %455 = vmatprep.subr.mxu0 0.0
    %456 = vmatpush1.msra.mxu0 %v24
    %457 = vmatprep.subr.mxu0 0.0
    %458 = vmatpush1.msra.mxu0 %v25
    %459 = vmatprep.subr.mxu0 0.0
    %460 = vmatpush1.msra.mxu0 %v26
    %461 = vmatprep.subr.mxu0 0.0
    %462 = vmatpush1.msra.mxu0 %v27
    %463 = vmatprep.subr.mxu0 0.0
    %464 = vmatpush1.msra.mxu0 0.0
    %465 = vmatprep.subr.mxu0 0.0
    %466 = vmatpush1.msra.mxu0 0.0
    %467 = vmatprep.subr.mxu0 0.0
    %468 = vmatpush1.msra.mxu0 0.0
    %469 = vmatprep.subr.mxu0 0.0
    %470 = vmatpush1.msra.mxu0 0.0
    %471 = vmatprep.subr.mxu0 0.0
    %472 = vmatpush1.msra.mxu0 0.0
    %473 = vmatprep.subr.mxu0 0.0
    %474 = vmatpush1.msra.mxu0 0.0
    %475 = vmatprep.subr.mxu0 0.0
    %476 = vmatpush1.msra.mxu0 0.0
    %477 = vmatprep.subr.mxu0 0.0
    %478 = vmatpush1.msra.mxu0 0.0
    %479 = vmatprep.subr.mxu0 0.0
    %480 = vmatpush1.msra.mxu0 0.0
    %481 = vmatprep.subr.mxu0 0.0
    %482 = vmatpush1.msra.mxu0 0.0
    %483 = vmatprep.subr.mxu0 0.0
    %484 = vmatpush1.msra.mxu0 0.0
    %485 = vmatprep.subr.mxu0 0.0
    %486 = vmatpush1.msra.mxu0 0.0
    %487 = vmatprep.subr.mxu0 0.0
    %488 = vmatpush1.msra.mxu0 0.0
    %489 = vmatprep.subr.mxu0 0.0
    %490 = vmatpush1.msra.mxu0 0.0
    %491 = vmatprep.subr.mxu0 0.0
    %492 = vmatpush1.msra.mxu0 0.0
    %493 = vmatprep.subr.mxu0 0.0
    %494 = vmatpush1.msra.mxu0 0.0
    %495 = vmatprep.subr.mxu0 0.0
    %496 = vmatpush1.msra.mxu0 0.0
    %497 = vmatprep.subr.mxu0 0.0
    %498 = vmatpush1.msra.mxu0 0.0
    %499 = vmatprep.subr.mxu0 0.0
    %500 = vmatpush1.msra.mxu0 0.0
    %501 = vmatprep.subr.mxu0 0.0
    %502 = vmatpush1.msra.mxu0 0.0
    %503 = vmatprep.subr.mxu0 0.0
    %504 = vmatpush1.msra.mxu0 0.0
    %505 = vmatprep.subr.mxu0 0.0
    %506 = vmatpush1.msra.mxu0 0.0
    %507 = vmatprep.subr.mxu0 0.0
    %508 = vmatpush1.msra.mxu0 0.0
    %509 = vmatprep.subr.mxu0 0.0
    %510 = vmatpush1.msra.mxu0 0.0
    %511 = vmatprep.subr.mxu0 0.0
    %512 = vmatpush1.msra.mxu0 0.0
    %513 = vmatprep.subr.mxu0 0.0
    %514 = vmatpush1.msra.mxu0 0.0
    %515 = vmatprep.subr.mxu0 0.0
    %516 = vmatpush1.msra.mxu0 0.0
    %517 = vmatprep.subr.mxu0 0.0
    %518 = vmatpush1.msra.mxu0 0.0
    %519 = vmatprep.mubr.f32.mxu0 0.0
    %520 = vmatmul.mubr.f32.gmra.mrb[0].mxu0 %v453
    %v521 = vpop.f32.mrb[0].mxu0
    %v522 = vadd.f32 0.0, %v521
    %v523 = vpop.f32.mrb[0].mxu0
    %524 = vdwg.mxu0
    %v525 = vadd.f32 %v452, %v522
    %v526 = vxor.u32 %v525, 2147483648
    %v527 = vmul.f32 %v526, 1.442695
    %v528 = vpow.pop %v527
    %v529 = vadd.f32 %v528, 1.0
    %v530 = vrcp.pop %v529
    %v531 = vmul.f32 1.0, %v530
    %v532 = vtanh.pop %v525
    %v533 = vmul.f32 %v531, %v338
    %535 = vrot.lane.b32.xlu0 %v532, 64
    %v536 = vpop.permute.xlu0 %535
    %v538 = vmul.f32 %v531, %v536
    %540 = vrot.lane.b32.xlu0 %v538, 32
    %v541 = vpop.permute.xlu0 %540
    %v543 = vadd.f32 %v533, %v541
    %v544 = vtanh.pop %v543
    %546 = vrot.lane.b32.xlu0 %v544, 64
    %v547 = vpop.permute.xlu0 %546
    %v549 = vmul.f32 %v531, %v547
    %551 = vrot.lane.b32.xlu0 %v549, 32
    %v552 = vpop.permute.xlu0 %551
    %555 = vrot.lane.b32.xlu0 %v450, 64
    %v556 = vpop.permute.xlu0 %555
    %v558 = vsel %vm44, %v552, %v556
    %v560 = vsel %vm148, %v558, 0
    %562 = vmatprep.subr.mxu0 0.0
    %563 = vmatpush1.msra.mxu0 %v28
    %564 = vmatprep.subr.mxu0 0.0
    %565 = vmatpush1.msra.mxu0 %v29
    %566 = vmatprep.subr.mxu0 0.0
    %567 = vmatpush1.msra.mxu0 %v30
    %568 = vmatprep.subr.mxu0 0.0
    %569 = vmatpush1.msra.mxu0 %v31
    %570 = vmatprep.subr.mxu0 0.0
    %571 = vmatpush1.msra.mxu0 %v32
    %572 = vmatprep.subr.mxu0 0.0
    %573 = vmatpush1.msra.mxu0 %v33
    %574 = vmatprep.subr.mxu0 0.0
    %575 = vmatpush1.msra.mxu0 %v34
    %576 = vmatprep.subr.mxu0 0.0
    %577 = vmatpush1.msra.mxu0 %v35
    %578 = vmatprep.subr.mxu0 0.0
    %579 = vmatpush1.msra.mxu0 0.0
    %580 = vmatprep.subr.mxu0 0.0
    %581 = vmatpush1.msra.mxu0 0.0
    %582 = vmatprep.subr.mxu0 0.0
    %583 = vmatpush1.msra.mxu0 0.0
    %584 = vmatprep.subr.mxu0 0.0
    %585 = vmatpush1.msra.mxu0 0.0
    %586 = vmatprep.subr.mxu0 0.0
    %587 = vmatpush1.msra.mxu0 0.0
    %588 = vmatprep.subr.mxu0 0.0
    %589 = vmatpush1.msra.mxu0 0.0
    %590 = vmatprep.subr.mxu0 0.0
    %591 = vmatpush1.msra.mxu0 0.0
    %592 = vmatprep.subr.mxu0 0.0
    %593 = vmatpush1.msra.mxu0 0.0
    %594 = vmatprep.subr.mxu0 0.0
    %595 = vmatpush1.msra.mxu0 0.0
    %596 = vmatprep.subr.mxu0 0.0
    %597 = vmatpush1.msra.mxu0 0.0
    %598 = vmatprep.subr.mxu0 0.0
    %599 = vmatpush1.msra.mxu0 0.0
    %600 = vmatprep.subr.mxu0 0.0
    %601 = vmatpush1.msra.mxu0 0.0
    %602 = vmatprep.subr.mxu0 0.0
    %603 = vmatpush1.msra.mxu0 0.0
    %604 = vmatprep.subr.mxu0 0.0
    %605 = vmatpush1.msra.mxu0 0.0
    %606 = vmatprep.subr.mxu0 0.0
    %607 = vmatpush1.msra.mxu0 0.0
    %608 = vmatprep.subr.mxu0 0.0
    %609 = vmatpush1.msra.mxu0 0.0
    %610 = vmatprep.subr.mxu0 0.0
    %611 = vmatpush1.msra.mxu0 0.0
    %612 = vmatprep.subr.mxu0 0.0
    %613 = vmatpush1.msra.mxu0 0.0
    %614 = vmatprep.subr.mxu0 0.0
    %615 = vmatpush1.msra.mxu0 0.0
    %616 = vmatprep.subr.mxu0 0.0
    %617 = vmatpush1.msra.mxu0 0.0
    %618 = vmatprep.subr.mxu0 0.0
    %619 = vmatpush1.msra.mxu0 0.0
    %620 = vmatprep.subr.mxu0 0.0
    %621 = vmatpush1.msra.mxu0 0.0
    %622 = vmatprep.subr.mxu0 0.0
    %623 = vmatpush1.msra.mxu0 0.0
    %624 = vmatprep.subr.mxu0 0.0
    %625 = vmatpush1.msra.mxu0 0.0
    %626 = vmatprep.mubr.f32.mxu0 0.0
    %627 = vmatmul.mubr.f32.gmra.mrb[0].mxu0 %v560
    %v628 = vpop.f32.mrb[0].mxu0
    %v629 = vadd.f32 %v41, %v628
    %v630 = vpop.f32.mrb[0].mxu0
    %631 = vdwg.mxu0
    %v632 = vxor.u32 %v629, 2147483648
    %v633 = vmul.f32 %v632, 1.442695
    %v634 = vpow.pop %v633
    %v635 = vadd.f32 %v634, 1.0
    %v636 = vrcp.pop %v635
    %v637 = vmul.f32 1.0, %v636
    %v638 = vtanh.pop %v629
    %v639 = vmul.f32 %v637, %v444
    %641 = vrot.lane.b32.xlu0 %v638, 64
    %v642 = vpop.permute.xlu0 %641
    %v644 = vmul.f32 %v637, %v642
    %646 = vrot.lane.b32.xlu0 %v644, 32
    %v647 = vpop.permute.xlu0 %646
    %v649 = vadd.f32 %v639, %v647
    %v650 = vtanh.pop %v649
    %652 = vrot.lane.b32.xlu0 %v650, 64
    %v653 = vpop.permute.xlu0 %652
    %v655 = vmul.f32 %v637, %v653
    %s656 = scalar_lea.vmem %s0, 6
    %v657 = vld [vmem:[%s656] sm:$0x3]
    %v658 = vsel %vm44, %v552, 0
    %660 = vmatprep.subr.mxu0 0.0
    %661 = vmatpush1.msra.mxu0 %v24
    %662 = vmatprep.subr.mxu0 0.0
    %663 = vmatpush1.msra.mxu0 %v25
    %664 = vmatprep.subr.mxu0 0.0
    %665 = vmatpush1.msra.mxu0 %v26
    %666 = vmatprep.subr.mxu0 0.0
    %667 = vmatpush1.msra.mxu0 %v27
    %668 = vmatprep.subr.mxu0 0.0
    %669 = vmatpush1.msra.mxu0 0.0
    %670 = vmatprep.subr.mxu0 0.0
    %671 = vmatpush1.msra.mxu0 0.0
    %672 = vmatprep.subr.mxu0 0.0
    %673 = vmatpush1.msra.mxu0 0.0
    %674 = vmatprep.subr.mxu0 0.0
    %675 = vmatpush1.msra.mxu0 0.0
    %676 = vmatprep.subr.mxu0 0.0
    %677 = vmatpush1.msra.mxu0 0.0
    %678 = vmatprep.subr.mxu0 0.0
    %679 = vmatpush1.msra.mxu0 0.0
    %680 = vmatprep.subr.mxu0 0.0
    %681 = vmatpush1.msra.mxu0 0.0
    %682 = vmatprep.subr.mxu0 0.0
    %683 = vmatpush1.msra.mxu0 0.0
    %684 = vmatprep.subr.mxu0 0.0
    %685 = vmatpush1.msra.mxu0 0.0
    %686 = vmatprep.subr.mxu0 0.0
    %687 = vmatpush1.msra.mxu0 0.0
    %688 = vmatprep.subr.mxu0 0.0
    %689 = vmatpush1.msra.mxu0 0.0
    %690 = vmatprep.subr.mxu0 0.0
    %691 = vmatpush1.msra.mxu0 0.0
    %692 = vmatprep.subr.mxu0 0.0
    %693 = vmatpush1.msra.mxu0 0.0
    %694 = vmatprep.subr.mxu0 0.0
    %695 = vmatpush1.msra.mxu0 0.0
    %696 = vmatprep.subr.mxu0 0.0
    %697 = vmatpush1.msra.mxu0 0.0
    %698 = vmatprep.subr.mxu0 0.0
    %699 = vmatpush1.msra.mxu0 0.0
    %700 = vmatprep.subr.mxu0 0.0
    %701 = vmatpush1.msra.mxu0 0.0
    %702 = vmatprep.subr.mxu0 0.0
    %703 = vmatpush1.msra.mxu0 0.0
    %704 = vmatprep.subr.mxu0 0.0
    %705 = vmatpush1.msra.mxu0 0.0
    %706 = vmatprep.subr.mxu0 0.0
    %707 = vmatpush1.msra.mxu0 0.0
    %708 = vmatprep.subr.mxu0 0.0
    %709 = vmatpush1.msra.mxu0 0.0
    %710 = vmatprep.subr.mxu0 0.0
    %711 = vmatpush1.msra.mxu0 0.0
    %712 = vmatprep.subr.mxu0 0.0
    %713 = vmatpush1.msra.mxu0 0.0
    %714 = vmatprep.subr.mxu0 0.0
    %715 = vmatpush1.msra.mxu0 0.0
    %716 = vmatprep.subr.mxu0 0.0
    %717 = vmatpush1.msra.mxu0 0.0
    %718 = vmatprep.subr.mxu0 0.0
    %719 = vmatpush1.msra.mxu0 0.0
    %720 = vmatprep.subr.mxu0 0.0
    %721 = vmatpush1.msra.mxu0 0.0
    %722 = vmatprep.subr.mxu0 0.0
    %723 = vmatpush1.msra.mxu0 0.0
    %724 = vmatprep.mubr.f32.mxu0 0.0
    %725 = vmatmul.mubr.f32.gmra.mrb[0].mxu0 %v658
    %v726 = vpop.f32.mrb[0].mxu0
    %v727 = vadd.f32 0.0, %v726
    %v728 = vpop.f32.mrb[0].mxu0
    %729 = vdwg.mxu0
    %v730 = vadd.f32 %v657, %v727
    %v731 = vxor.u32 %v730, 2147483648
    %v732 = vmul.f32 %v731, 1.442695
    %v733 = vpow.pop %v732
    %v734 = vadd.f32 %v733, 1.0
    %v735 = vrcp.pop %v734
    %v736 = vmul.f32 1.0, %v735
    %v737 = vtanh.pop %v730
    %v738 = vmul.f32 %v736, %v543
    %740 = vrot.lane.b32.xlu0 %v737, 64
    %v741 = vpop.permute.xlu0 %740
    %v743 = vmul.f32 %v736, %v741
    %745 = vrot.lane.b32.xlu0 %v743, 32
    %v746 = vpop.permute.xlu0 %745
    %v748 = vadd.f32 %v738, %v746
    %v749 = vtanh.pop %v748
    %751 = vrot.lane.b32.xlu0 %v749, 64
    %v752 = vpop.permute.xlu0 %751
    %v754 = vmul.f32 %v736, %v752
    %756 = vrot.lane.b32.xlu0 %v754, 32
    %v757 = vpop.permute.xlu0 %756
    %760 = vrot.lane.b32.xlu0 %v655, 64
    %v761 = vpop.permute.xlu0 %760
    %v763 = vsel %vm44, %v757, %v761
    %v765 = vsel %vm148, %v763, 0
    %767 = vmatprep.subr.mxu0 0.0
    %768 = vmatpush1.msra.mxu0 %v28
    %769 = vmatprep.subr.mxu0 0.0
    %770 = vmatpush1.msra.mxu0 %v29
    %771 = vmatprep.subr.mxu0 0.0
    %772 = vmatpush1.msra.mxu0 %v30
    %773 = vmatprep.subr.mxu0 0.0
    %774 = vmatpush1.msra.mxu0 %v31
    %775 = vmatprep.subr.mxu0 0.0
    %776 = vmatpush1.msra.mxu0 %v32
    %777 = vmatprep.subr.mxu0 0.0
    %778 = vmatpush1.msra.mxu0 %v33
    %779 = vmatprep.subr.mxu0 0.0
    %780 = vmatpush1.msra.mxu0 %v34
    %781 = vmatprep.subr.mxu0 0.0
    %782 = vmatpush1.msra.mxu0 %v35
    %783 = vmatprep.subr.mxu0 0.0
    %784 = vmatpush1.msra.mxu0 0.0
    %785 = vmatprep.subr.mxu0 0.0
    %786 = vmatpush1.msra.mxu0 0.0
    %787 = vmatprep.subr.mxu0 0.0
    %788 = vmatpush1.msra.mxu0 0.0
    %789 = vmatprep.subr.mxu0 0.0
    %790 = vmatpush1.msra.mxu0 0.0
    %791 = vmatprep.subr.mxu0 0.0
    %792 = vmatpush1.msra.mxu0 0.0
    %793 = vmatprep.subr.mxu0 0.0
    %794 = vmatpush1.msra.mxu0 0.0
    %795 = vmatprep.subr.mxu0 0.0
    %796 = vmatpush1.msra.mxu0 0.0
    %797 = vmatprep.subr.mxu0 0.0
    %798 = vmatpush1.msra.mxu0 0.0
    %799 = vmatprep.subr.mxu0 0.0
    %800 = vmatpush1.msra.mxu0 0.0
    %801 = vmatprep.subr.mxu0 0.0
    %802 = vmatpush1.msra.mxu0 0.0
    %803 = vmatprep.subr.mxu0 0.0
    %804 = vmatpush1.msra.mxu0 0.0
    %805 = vmatprep.subr.mxu0 0.0
    %806 = vmatpush1.msra.mxu0 0.0
    %807 = vmatprep.subr.mxu0 0.0
    %808 = vmatpush1.msra.mxu0 0.0
    %809 = vmatprep.subr.mxu0 0.0
    %810 = vmatpush1.msra.mxu0 0.0
    %811 = vmatprep.subr.mxu0 0.0
    %812 = vmatpush1.msra.mxu0 0.0
    %813 = vmatprep.subr.mxu0 0.0
    %814 = vmatpush1.msra.mxu0 0.0
    %815 = vmatprep.subr.mxu0 0.0
    %816 = vmatpush1.msra.mxu0 0.0
    %817 = vmatprep.subr.mxu0 0.0
    %818 = vmatpush1.msra.mxu0 0.0
    %819 = vmatprep.subr.mxu0 0.0
    %820 = vmatpush1.msra.mxu0 0.0
    %821 = vmatprep.subr.mxu0 0.0
    %822 = vmatpush1.msra.mxu0 0.0
    %823 = vmatprep.subr.mxu0 0.0
    %824 = vmatpush1.msra.mxu0 0.0
    %825 = vmatprep.subr.mxu0 0.0
    %826 = vmatpush1.msra.mxu0 0.0
    %827 = vmatprep.subr.mxu0 0.0
    %828 = vmatpush1.msra.mxu0 0.0
    %829 = vmatprep.subr.mxu0 0.0
    %830 = vmatpush1.msra.mxu0 0.0
    %831 = vmatprep.mubr.f32.mxu0 0.0
    %832 = vmatmul.mubr.f32.gmra.mrb[0].mxu0 %v765
    %v833 = vpop.f32.mrb[0].mxu0
    %v834 = vadd.f32 %v41, %v833
    %v835 = vpop.f32.mrb[0].mxu0
    %836 = vdwg.mxu0
    %v837 = vxor.u32 %v834, 2147483648
    %v838 = vmul.f32 %v837, 1.442695
    %v839 = vpow.pop %v838
    %v840 = vadd.f32 %v839, 1.0
    %v841 = vrcp.pop %v840
    %v842 = vmul.f32 1.0, %v841
    %v843 = vtanh.pop %v834
    %v844 = vmul.f32 %v842, %v649
    %846 = vrot.lane.b32.xlu0 %v843, 64
    %v847 = vpop.permute.xlu0 %846
    %v849 = vmul.f32 %v842, %v847
    %851 = vrot.lane.b32.xlu0 %v849, 32
    %v852 = vpop.permute.xlu0 %851
    %v854 = vadd.f32 %v844, %v852
    %v855 = vtanh.pop %v854
    %857 = vrot.lane.b32.xlu0 %v855, 64
    %v858 = vpop.permute.xlu0 %857
    %v860 = vmul.f32 %v842, %v858
    %s861 = scalar_lea.vmem %s0, 8
    %v862 = vld [vmem:[%s861] sm:$0x3]
    %v863 = vsel %vm44, %v757, 0
    %865 = vmatprep.subr.mxu0 0.0
    %866 = vmatpush1.msra.mxu0 %v24
    %867 = vmatprep.subr.mxu0 0.0
    %868 = vmatpush1.msra.mxu0 %v25
    %869 = vmatprep.subr.mxu0 0.0
    %870 = vmatpush1.msra.mxu0 %v26
    %871 = vmatprep.subr.mxu0 0.0
    %872 = vmatpush1.msra.mxu0 %v27
    %873 = vmatprep.subr.mxu0 0.0
    %874 = vmatpush1.msra.mxu0 0.0
    %875 = vmatprep.subr.mxu0 0.0
    %876 = vmatpush1.msra.mxu0 0.0
    %877 = vmatprep.subr.mxu0 0.0
    %878 = vmatpush1.msra.mxu0 0.0
    %879 = vmatprep.subr.mxu0 0.0
    %880 = vmatpush1.msra.mxu0 0.0
    %881 = vmatprep.subr.mxu0 0.0
    %882 = vmatpush1.msra.mxu0 0.0
    %883 = vmatprep.subr.mxu0 0.0
    %884 = vmatpush1.msra.mxu0 0.0
    %885 = vmatprep.subr.mxu0 0.0
    %886 = vmatpush1.msra.mxu0 0.0
    %887 = vmatprep.subr.mxu0 0.0
    %888 = vmatpush1.msra.mxu0 0.0
    %889 = vmatprep.subr.mxu0 0.0
    %890 = vmatpush1.msra.mxu0 0.0
    %891 = vmatprep.subr.mxu0 0.0
    %892 = vmatpush1.msra.mxu0 0.0
    %893 = vmatprep.subr.mxu0 0.0
    %894 = vmatpush1.msra.mxu0 0.0
    %895 = vmatprep.subr.mxu0 0.0
    %896 = vmatpush1.msra.mxu0 0.0
    %897 = vmatprep.subr.mxu0 0.0
    %898 = vmatpush1.msra.mxu0 0.0
    %899 = vmatprep.subr.mxu0 0.0
    %900 = vmatpush1.msra.mxu0 0.0
    %901 = vmatprep.subr.mxu0 0.0
    %902 = vmatpush1.msra.mxu0 0.0
    %903 = vmatprep.subr.mxu0 0.0
    %904 = vmatpush1.msra.mxu0 0.0
    %905 = vmatprep.subr.mxu0 0.0
    %906 = vmatpush1.msra.mxu0 0.0
    %907 = vmatprep.subr.mxu0 0.0
    %908 = vmatpush1.msra.mxu0 0.0
    %909 = vmatprep.subr.mxu0 0.0
    %910 = vmatpush1.msra.mxu0 0.0
    %911 = vmatprep.subr.mxu0 0.0
    %912 = vmatpush1.msra.mxu0 0.0
    %913 = vmatprep.subr.mxu0 0.0
    %914 = vmatpush1.msra.mxu0 0.0
    %915 = vmatprep.subr.mxu0 0.0
    %916 = vmatpush1.msra.mxu0 0.0
    %917 = vmatprep.subr.mxu0 0.0
    %918 = vmatpush1.msra.mxu0 0.0
    %919 = vmatprep.subr.mxu0 0.0
    %920 = vmatpush1.msra.mxu0 0.0
    %921 = vmatprep.subr.mxu0 0.0
    %922 = vmatpush1.msra.mxu0 0.0
    %923 = vmatprep.subr.mxu0 0.0
    %924 = vmatpush1.msra.mxu0 0.0
    %925 = vmatprep.subr.mxu0 0.0
    %926 = vmatpush1.msra.mxu0 0.0
    %927 = vmatprep.subr.mxu0 0.0
    %928 = vmatpush1.msra.mxu0 0.0
    %929 = vmatprep.mubr.f32.mxu0 0.0
    %930 = vmatmul.mubr.f32.gmra.mrb[0].mxu0 %v863
    %v931 = vpop.f32.mrb[0].mxu0
    %v932 = vadd.f32 0.0, %v931
    %v933 = vpop.f32.mrb[0].mxu0
    %934 = vdwg.mxu0
    %v935 = vadd.f32 %v862, %v932
    %v936 = vxor.u32 %v935, 2147483648
    %v937 = vmul.f32 %v936, 1.442695
    %v938 = vpow.pop %v937
    %v939 = vadd.f32 %v938, 1.0
    %v940 = vrcp.pop %v939
    %v941 = vmul.f32 1.0, %v940
    %v942 = vtanh.pop %v935
    %v943 = vmul.f32 %v941, %v748
    %945 = vrot.lane.b32.xlu0 %v942, 64
    %v946 = vpop.permute.xlu0 %945
    %v948 = vmul.f32 %v941, %v946
    %950 = vrot.lane.b32.xlu0 %v948, 32
    %v951 = vpop.permute.xlu0 %950
    %v953 = vadd.f32 %v943, %v951
    %v954 = vtanh.pop %v953
    %956 = vrot.lane.b32.xlu0 %v954, 64
    %v957 = vpop.permute.xlu0 %956
    %v959 = vmul.f32 %v941, %v957
    %961 = vrot.lane.b32.xlu0 %v959, 32
    %v962 = vpop.permute.xlu0 %961
    %965 = vrot.lane.b32.xlu0 %v860, 64
    %v966 = vpop.permute.xlu0 %965
    %v968 = vsel %vm44, %v962, %v966
    %v970 = vsel %vm148, %v968, 0
    %972 = vmatprep.subr.mxu0 0.0
    %973 = vmatpush1.msra.mxu0 %v28
    %974 = vmatprep.subr.mxu0 0.0
    %975 = vmatpush1.msra.mxu0 %v29
    %976 = vmatprep.subr.mxu0 0.0
    %977 = vmatpush1.msra.mxu0 %v30
    %978 = vmatprep.subr.mxu0 0.0
    %979 = vmatpush1.msra.mxu0 %v31
    %980 = vmatprep.subr.mxu0 0.0
    %981 = vmatpush1.msra.mxu0 %v32
    %982 = vmatprep.subr.mxu0 0.0
    %983 = vmatpush1.msra.mxu0 %v33
    %984 = vmatprep.subr.mxu0 0.0
    %985 = vmatpush1.msra.mxu0 %v34
    %986 = vmatprep.subr.mxu0 0.0
    %987 = vmatpush1.msra.mxu0 %v35
    %988 = vmatprep.subr.mxu0 0.0
    %989 = vmatpush1.msra.mxu0 0.0
    %990 = vmatprep.subr.mxu0 0.0
    %991 = vmatpush1.msra.mxu0 0.0
    %992 = vmatprep.subr.mxu0 0.0
    %993 = vmatpush1.msra.mxu0 0.0
    %994 = vmatprep.subr.mxu0 0.0
    %995 = vmatpush1.msra.mxu0 0.0
    %996 = vmatprep.subr.mxu0 0.0
    %997 = vmatpush1.msra.mxu0 0.0
    %998 = vmatprep.subr.mxu0 0.0
    %999 = vmatpush1.msra.mxu0 0.0
    %1000 = vmatprep.subr.mxu0 0.0
    %1001 = vmatpush1.msra.mxu0 0.0
    %1002 = vmatprep.subr.mxu0 0.0
    %1003 = vmatpush1.msra.mxu0 0.0
    %1004 = vmatprep.subr.mxu0 0.0
    %1005 = vmatpush1.msra.mxu0 0.0
    %1006 = vmatprep.subr.mxu0 0.0
    %1007 = vmatpush1.msra.mxu0 0.0
    %1008 = vmatprep.subr.mxu0 0.0
    %1009 = vmatpush1.msra.mxu0 0.0
    %1010 = vmatprep.subr.mxu0 0.0
    %1011 = vmatpush1.msra.mxu0 0.0
    %1012 = vmatprep.subr.mxu0 0.0
    %1013 = vmatpush1.msra.mxu0 0.0
    %1014 = vmatprep.subr.mxu0 0.0
    %1015 = vmatpush1.msra.mxu0 0.0
    %1016 = vmatprep.subr.mxu0 0.0
    %1017 = vmatpush1.msra.mxu0 0.0
    %1018 = vmatprep.subr.mxu0 0.0
    %1019 = vmatpush1.msra.mxu0 0.0
    %1020 = vmatprep.subr.mxu0 0.0
    %1021 = vmatpush1.msra.mxu0 0.0
    %1022 = vmatprep.subr.mxu0 0.0
    %1023 = vmatpush1.msra.mxu0 0.0
    %1024 = vmatprep.subr.mxu0 0.0
    %1025 = vmatpush1.msra.mxu0 0.0
    %1026 = vmatprep.subr.mxu0 0.0
    %1027 = vmatpush1.msra.mxu0 0.0
    %1028 = vmatprep.subr.mxu0 0.0
    %1029 = vmatpush1.msra.mxu0 0.0
    %1030 = vmatprep.subr.mxu0 0.0
    %1031 = vmatpush1.msra.mxu0 0.0
    %1032 = vmatprep.subr.mxu0 0.0
    %1033 = vmatpush1.msra.mxu0 0.0
    %1034 = vmatprep.subr.mxu0 0.0
    %1035 = vmatpush1.msra.mxu0 0.0
    %1036 = vmatprep.mubr.f32.mxu0 0.0
    %1037 = vmatmul.mubr.f32.gmra.mrb[0].mxu0 %v970
    %v1038 = vpop.f32.mrb[0].mxu0
    %v1039 = vadd.f32 %v41, %v1038
    %v1040 = vpop.f32.mrb[0].mxu0
    %1041 = vdwg.mxu0
    %v1042 = vxor.u32 %v1039, 2147483648
    %v1043 = vmul.f32 %v1042, 1.442695
    %v1044 = vpow.pop %v1043
    %v1045 = vadd.f32 %v1044, 1.0
    %v1046 = vrcp.pop %v1045
    %v1047 = vmul.f32 1.0, %v1046
    %v1048 = vtanh.pop %v1039
    %v1049 = vmul.f32 %v1047, %v854
    %1051 = vrot.lane.b32.xlu0 %v1048, 64
    %v1052 = vpop.permute.xlu0 %1051
    %v1054 = vmul.f32 %v1047, %v1052
    %1056 = vrot.lane.b32.xlu0 %v1054, 32
    %v1057 = vpop.permute.xlu0 %1056
    %v1059 = vadd.f32 %v1049, %v1057
    %v1060 = vtanh.pop %v1059
    %1062 = vrot.lane.b32.xlu0 %v1060, 64
    %v1063 = vpop.permute.xlu0 %1062
    %v1065 = vmul.f32 %v1047, %v1063
    %s1066 = scalar_lea.vmem %s0, 10
    %v1067 = vld [vmem:[%s1066] sm:$0x3]
    %v1068 = vsel %vm44, %v962, 0
    %1070 = vmatprep.subr.mxu0 0.0
    %1071 = vmatpush1.msra.mxu0 %v24
    %1072 = vmatprep.subr.mxu0 0.0
    %1073 = vmatpush1.msra.mxu0 %v25
    %1074 = vmatprep.subr.mxu0 0.0
    %1075 = vmatpush1.msra.mxu0 %v26
    %1076 = vmatprep.subr.mxu0 0.0
    %1077 = vmatpush1.msra.mxu0 %v27
    %1078 = vmatprep.subr.mxu0 0.0
    %1079 = vmatpush1.msra.mxu0 0.0
    %1080 = vmatprep.subr.mxu0 0.0
    %1081 = vmatpush1.msra.mxu0 0.0
    %1082 = vmatprep.subr.mxu0 0.0
    %1083 = vmatpush1.msra.mxu0 0.0
    %1084 = vmatprep.subr.mxu0 0.0
    %1085 = vmatpush1.msra.mxu0 0.0
    %1086 = vmatprep.subr.mxu0 0.0
    %1087 = vmatpush1.msra.mxu0 0.0
    %1088 = vmatprep.subr.mxu0 0.0
    %1089 = vmatpush1.msra.mxu0 0.0
    %1090 = vmatprep.subr.mxu0 0.0
    %1091 = vmatpush1.msra.mxu0 0.0
    %1092 = vmatprep.subr.mxu0 0.0
    %1093 = vmatpush1.msra.mxu0 0.0
    %1094 = vmatprep.subr.mxu0 0.0
    %1095 = vmatpush1.msra.mxu0 0.0
    %1096 = vmatprep.subr.mxu0 0.0
    %1097 = vmatpush1.msra.mxu0 0.0
    %1098 = vmatprep.subr.mxu0 0.0
    %1099 = vmatpush1.msra.mxu0 0.0
    %1100 = vmatprep.subr.mxu0 0.0
    %1101 = vmatpush1.msra.mxu0 0.0
    %1102 = vmatprep.subr.mxu0 0.0
    %1103 = vmatpush1.msra.mxu0 0.0
    %1104 = vmatprep.subr.mxu0 0.0
    %1105 = vmatpush1.msra.mxu0 0.0
    %1106 = vmatprep.subr.mxu0 0.0
    %1107 = vmatpush1.msra.mxu0 0.0
    %1108 = vmatprep.subr.mxu0 0.0
    %1109 = vmatpush1.msra.mxu0 0.0
    %1110 = vmatprep.subr.mxu0 0.0
    %1111 = vmatpush1.msra.mxu0 0.0
    %1112 = vmatprep.subr.mxu0 0.0
    %1113 = vmatpush1.msra.mxu0 0.0
    %1114 = vmatprep.subr.mxu0 0.0
    %1115 = vmatpush1.msra.mxu0 0.0
    %1116 = vmatprep.subr.mxu0 0.0
    %1117 = vmatpush1.msra.mxu0 0.0
    %1118 = vmatprep.subr.mxu0 0.0
    %1119 = vmatpush1.msra.mxu0 0.0
    %1120 = vmatprep.subr.mxu0 0.0
    %1121 = vmatpush1.msra.mxu0 0.0
    %1122 = vmatprep.subr.mxu0 0.0
    %1123 = vmatpush1.msra.mxu0 0.0
    %1124 = vmatprep.subr.mxu0 0.0
    %1125 = vmatpush1.msra.mxu0 0.0
    %1126 = vmatprep.subr.mxu0 0.0
    %1127 = vmatpush1.msra.mxu0 0.0
    %1128 = vmatprep.subr.mxu0 0.0
    %1129 = vmatpush1.msra.mxu0 0.0
    %1130 = vmatprep.subr.mxu0 0.0
    %1131 = vmatpush1.msra.mxu0 0.0
    %1132 = vmatprep.subr.mxu0 0.0
    %1133 = vmatpush1.msra.mxu0 0.0
    %1134 = vmatprep.mubr.f32.mxu0 0.0
    %1135 = vmatmul.mubr.f32.gmra.mrb[0].mxu0 %v1068
    %v1136 = vpop.f32.mrb[0].mxu0
    %v1137 = vadd.f32 0.0, %v1136
    %v1138 = vpop.f32.mrb[0].mxu0
    %1139 = vdwg.mxu0
    %v1140 = vadd.f32 %v1067, %v1137
    %v1141 = vxor.u32 %v1140, 2147483648
    %v1142 = vmul.f32 %v1141, 1.442695
    %v1143 = vpow.pop %v1142
    %v1144 = vadd.f32 %v1143, 1.0
    %v1145 = vrcp.pop %v1144
    %v1146 = vmul.f32 1.0, %v1145
    %v1147 = vtanh.pop %v1140
    %v1148 = vmul.f32 %v1146, %v953
    %1150 = vrot.lane.b32.xlu0 %v1147, 64
    %v1151 = vpop.permute.xlu0 %1150
    %v1153 = vmul.f32 %v1146, %v1151
    %1155 = vrot.lane.b32.xlu0 %v1153, 32
    %v1156 = vpop.permute.xlu0 %1155
    %v1158 = vadd.f32 %v1148, %v1156
    %v1159 = vtanh.pop %v1158
    %1161 = vrot.lane.b32.xlu0 %v1159, 64
    %v1162 = vpop.permute.xlu0 %1161
    %v1164 = vmul.f32 %v1146, %v1162
    %1166 = vrot.lane.b32.xlu0 %v1164, 32
    %v1167 = vpop.permute.xlu0 %1166
    %1170 = vrot.lane.b32.xlu0 %v1065, 64
    %v1171 = vpop.permute.xlu0 %1170
    %v1173 = vsel %vm44, %v1167, %v1171
    %v1175 = vsel %vm148, %v1173, 0
    %1177 = vmatprep.subr.mxu0 0.0
    %1178 = vmatpush1.msra.mxu0 %v28
    %1179 = vmatprep.subr.mxu0 0.0
    %1180 = vmatpush1.msra.mxu0 %v29
    %1181 = vmatprep.subr.mxu0 0.0
    %1182 = vmatpush1.msra.mxu0 %v30
    %1183 = vmatprep.subr.mxu0 0.0
    %1184 = vmatpush1.msra.mxu0 %v31
    %1185 = vmatprep.subr.mxu0 0.0
    %1186 = vmatpush1.msra.mxu0 %v32
    %1187 = vmatprep.subr.mxu0 0.0
    %1188 = vmatpush1.msra.mxu0 %v33
    %1189 = vmatprep.subr.mxu0 0.0
    %1190 = vmatpush1.msra.mxu0 %v34
    %1191 = vmatprep.subr.mxu0 0.0
    %1192 = vmatpush1.msra.mxu0 %v35
    %1193 = vmatprep.subr.mxu0 0.0
    %1194 = vmatpush1.msra.mxu0 0.0
    %1195 = vmatprep.subr.mxu0 0.0
    %1196 = vmatpush1.msra.mxu0 0.0
    %1197 = vmatprep.subr.mxu0 0.0
    %1198 = vmatpush1.msra.mxu0 0.0
    %1199 = vmatprep.subr.mxu0 0.0
    %1200 = vmatpush1.msra.mxu0 0.0
    %1201 = vmatprep.subr.mxu0 0.0
    %1202 = vmatpush1.msra.mxu0 0.0
    %1203 = vmatprep.subr.mxu0 0.0
    %1204 = vmatpush1.msra.mxu0 0.0
    %1205 = vmatprep.subr.mxu0 0.0
    %1206 = vmatpush1.msra.mxu0 0.0
    %1207 = vmatprep.subr.mxu0 0.0
    %1208 = vmatpush1.msra.mxu0 0.0
    %1209 = vmatprep.subr.mxu0 0.0
    %1210 = vmatpush1.msra.mxu0 0.0
    %1211 = vmatprep.subr.mxu0 0.0
    %1212 = vmatpush1.msra.mxu0 0.0
    %1213 = vmatprep.subr.mxu0 0.0
    %1214 = vmatpush1.msra.mxu0 0.0
    %1215 = vmatprep.subr.mxu0 0.0
    %1216 = vmatpush1.msra.mxu0 0.0
    %1217 = vmatprep.subr.mxu0 0.0
    %1218 = vmatpush1.msra.mxu0 0.0
    %1219 = vmatprep.subr.mxu0 0.0
    %1220 = vmatpush1.msra.mxu0 0.0
    %1221 = vmatprep.subr.mxu0 0.0
    %1222 = vmatpush1.msra.mxu0 0.0
    %1223 = vmatprep.subr.mxu0 0.0
    %1224 = vmatpush1.msra.mxu0 0.0
    %1225 = vmatprep.subr.mxu0 0.0
    %1226 = vmatpush1.msra.mxu0 0.0
    %1227 = vmatprep.subr.mxu0 0.0
    %1228 = vmatpush1.msra.mxu0 0.0
    %1229 = vmatprep.subr.mxu0 0.0
    %1230 = vmatpush1.msra.mxu0 0.0
    %1231 = vmatprep.subr.mxu0 0.0
    %1232 = vmatpush1.msra.mxu0 0.0
    %1233 = vmatprep.subr.mxu0 0.0
    %1234 = vmatpush1.msra.mxu0 0.0
    %1235 = vmatprep.subr.mxu0 0.0
    %1236 = vmatpush1.msra.mxu0 0.0
    %1237 = vmatprep.subr.mxu0 0.0
    %1238 = vmatpush1.msra.mxu0 0.0
    %1239 = vmatprep.subr.mxu0 0.0
    %1240 = vmatpush1.msra.mxu0 0.0
    %1241 = vmatprep.mubr.f32.mxu0 0.0
    %1242 = vmatmul.mubr.f32.gmra.mrb[0].mxu0 %v1175
    %v1243 = vpop.f32.mrb[0].mxu0
    %v1244 = vadd.f32 %v41, %v1243
    %v1245 = vpop.f32.mrb[0].mxu0
    %1246 = vdwg.mxu0
    %v1247 = vxor.u32 %v1244, 2147483648
    %v1248 = vmul.f32 %v1247, 1.442695
    %v1249 = vpow.pop %v1248
    %v1250 = vadd.f32 %v1249, 1.0
    %v1251 = vrcp.pop %v1250
    %v1252 = vmul.f32 1.0, %v1251
    %v1253 = vtanh.pop %v1244
    %v1254 = vmul.f32 %v1252, %v1059
    %1256 = vrot.lane.b32.xlu0 %v1253, 64
    %v1257 = vpop.permute.xlu0 %1256
    %v1259 = vmul.f32 %v1252, %v1257
    %1261 = vrot.lane.b32.xlu0 %v1259, 32
    %v1262 = vpop.permute.xlu0 %1261
    %v1264 = vadd.f32 %v1254, %v1262
    %v1265 = vtanh.pop %v1264
    %1267 = vrot.lane.b32.xlu0 %v1265, 64
    %v1268 = vpop.permute.xlu0 %1267
    %v1270 = vmul.f32 %v1252, %v1268
    %s1271 = scalar_lea.vmem %s0, 12
    %v1272 = vld [vmem:[%s1271] sm:$0x3]
    %v1273 = vsel %vm44, %v1167, 0
    %1275 = vmatprep.subr.mxu0 0.0
    %1276 = vmatpush1.msra.mxu0 %v24
    %1277 = vmatprep.subr.mxu0 0.0
    %1278 = vmatpush1.msra.mxu0 %v25
    %1279 = vmatprep.subr.mxu0 0.0
    %1280 = vmatpush1.msra.mxu0 %v26
    %1281 = vmatprep.subr.mxu0 0.0
    %1282 = vmatpush1.msra.mxu0 %v27
    %1283 = vmatprep.subr.mxu0 0.0
    %1284 = vmatpush1.msra.mxu0 0.0
    %1285 = vmatprep.subr.mxu0 0.0
    %1286 = vmatpush1.msra.mxu0 0.0
    %1287 = vmatprep.subr.mxu0 0.0
    %1288 = vmatpush1.msra.mxu0 0.0
    %1289 = vmatprep.subr.mxu0 0.0
    %1290 = vmatpush1.msra.mxu0 0.0
    %1291 = vmatprep.subr.mxu0 0.0
    %1292 = vmatpush1.msra.mxu0 0.0
    %1293 = vmatprep.subr.mxu0 0.0
    %1294 = vmatpush1.msra.mxu0 0.0
    %1295 = vmatprep.subr.mxu0 0.0
    %1296 = vmatpush1.msra.mxu0 0.0
    %1297 = vmatprep.subr.mxu0 0.0
    %1298 = vmatpush1.msra.mxu0 0.0
    %1299 = vmatprep.subr.mxu0 0.0
    %1300 = vmatpush1.msra.mxu0 0.0
    %1301 = vmatprep.subr.mxu0 0.0
    %1302 = vmatpush1.msra.mxu0 0.0
    %1303 = vmatprep.subr.mxu0 0.0
    %1304 = vmatpush1.msra.mxu0 0.0
    %1305 = vmatprep.subr.mxu0 0.0
    %1306 = vmatpush1.msra.mxu0 0.0
    %1307 = vmatprep.subr.mxu0 0.0
    %1308 = vmatpush1.msra.mxu0 0.0
    %1309 = vmatprep.subr.mxu0 0.0
    %1310 = vmatpush1.msra.mxu0 0.0
    %1311 = vmatprep.subr.mxu0 0.0
    %1312 = vmatpush1.msra.mxu0 0.0
    %1313 = vmatprep.subr.mxu0 0.0
    %1314 = vmatpush1.msra.mxu0 0.0
    %1315 = vmatprep.subr.mxu0 0.0
    %1316 = vmatpush1.msra.mxu0 0.0
    %1317 = vmatprep.subr.mxu0 0.0
    %1318 = vmatpush1.msra.mxu0 0.0
    %1319 = vmatprep.subr.mxu0 0.0
    %1320 = vmatpush1.msra.mxu0 0.0
    %1321 = vmatprep.subr.mxu0 0.0
    %1322 = vmatpush1.msra.mxu0 0.0
    %1323 = vmatprep.subr.mxu0 0.0
    %1324 = vmatpush1.msra.mxu0 0.0
    %1325 = vmatprep.subr.mxu0 0.0
    %1326 = vmatpush1.msra.mxu0 0.0
    %1327 = vmatprep.subr.mxu0 0.0
    %1328 = vmatpush1.msra.mxu0 0.0
    %1329 = vmatprep.subr.mxu0 0.0
    %1330 = vmatpush1.msra.mxu0 0.0
    %1331 = vmatprep.subr.mxu0 0.0
    %1332 = vmatpush1.msra.mxu0 0.0
    %1333 = vmatprep.subr.mxu0 0.0
    %1334 = vmatpush1.msra.mxu0 0.0
    %1335 = vmatprep.subr.mxu0 0.0
    %1336 = vmatpush1.msra.mxu0 0.0
    %1337 = vmatprep.subr.mxu0 0.0
    %1338 = vmatpush1.msra.mxu0 0.0
    %1339 = vmatprep.mubr.f32.mxu0 0.0
    %1340 = vmatmul.mubr.f32.gmra.mrb[0].mxu0 %v1273
    %v1341 = vpop.f32.mrb[0].mxu0
    %v1342 = vadd.f32 0.0, %v1341
    %v1343 = vpop.f32.mrb[0].mxu0
    %1344 = vdwg.mxu0
    %v1345 = vadd.f32 %v1272, %v1342
    %v1346 = vxor.u32 %v1345, 2147483648
    %v1347 = vmul.f32 %v1346, 1.442695
    %v1348 = vpow.pop %v1347
    %v1349 = vadd.f32 %v1348, 1.0
    %v1350 = vrcp.pop %v1349
    %v1351 = vmul.f32 1.0, %v1350
    %v1352 = vtanh.pop %v1345
    %v1353 = vmul.f32 %v1351, %v1158
    %1355 = vrot.lane.b32.xlu0 %v1352, 64
    %v1356 = vpop.permute.xlu0 %1355
    %v1358 = vmul.f32 %v1351, %v1356
    %1360 = vrot.lane.b32.xlu0 %v1358, 32
    %v1361 = vpop.permute.xlu0 %1360
    %v1363 = vadd.f32 %v1353, %v1361
    %v1364 = vtanh.pop %v1363
    %1366 = vrot.lane.b32.xlu0 %v1364, 64
    %v1367 = vpop.permute.xlu0 %1366
    %v1369 = vmul.f32 %v1351, %v1367
    %1371 = vrot.lane.b32.xlu0 %v1369, 32
    %v1372 = vpop.permute.xlu0 %1371
    %1375 = vrot.lane.b32.xlu0 %v1270, 64
    %v1376 = vpop.permute.xlu0 %1375
    %v1378 = vsel %vm44, %v1372, %v1376
    %v1380 = vsel %vm148, %v1378, 0
    %1382 = vmatprep.subr.mxu0 0.0
    %1383 = vmatpush1.msra.mxu0 %v28
    %1384 = vmatprep.subr.mxu0 0.0
    %1385 = vmatpush1.msra.mxu0 %v29
    %1386 = vmatprep.subr.mxu0 0.0
    %1387 = vmatpush1.msra.mxu0 %v30
    %1388 = vmatprep.subr.mxu0 0.0
    %1389 = vmatpush1.msra.mxu0 %v31
    %1390 = vmatprep.subr.mxu0 0.0
    %1391 = vmatpush1.msra.mxu0 %v32
    %1392 = vmatprep.subr.mxu0 0.0
    %1393 = vmatpush1.msra.mxu0 %v33
    %1394 = vmatprep.subr.mxu0 0.0
    %1395 = vmatpush1.msra.mxu0 %v34
    %1396 = vmatprep.subr.mxu0 0.0
    %1397 = vmatpush1.msra.mxu0 %v35
    %1398 = vmatprep.subr.mxu0 0.0
    %1399 = vmatpush1.msra.mxu0 0.0
    %1400 = vmatprep.subr.mxu0 0.0
    %1401 = vmatpush1.msra.mxu0 0.0
    %1402 = vmatprep.subr.mxu0 0.0
    %1403 = vmatpush1.msra.mxu0 0.0
    %1404 = vmatprep.subr.mxu0 0.0
    %1405 = vmatpush1.msra.mxu0 0.0
    %1406 = vmatprep.subr.mxu0 0.0
    %1407 = vmatpush1.msra.mxu0 0.0
    %1408 = vmatprep.subr.mxu0 0.0
    %1409 = vmatpush1.msra.mxu0 0.0
    %1410 = vmatprep.subr.mxu0 0.0
    %1411 = vmatpush1.msra.mxu0 0.0
    %1412 = vmatprep.subr.mxu0 0.0
    %1413 = vmatpush1.msra.mxu0 0.0
    %1414 = vmatprep.subr.mxu0 0.0
    %1415 = vmatpush1.msra.mxu0 0.0
    %1416 = vmatprep.subr.mxu0 0.0
    %1417 = vmatpush1.msra.mxu0 0.0
    %1418 = vmatprep.subr.mxu0 0.0
    %1419 = vmatpush1.msra.mxu0 0.0
    %1420 = vmatprep.subr.mxu0 0.0
    %1421 = vmatpush1.msra.mxu0 0.0
    %1422 = vmatprep.subr.mxu0 0.0
    %1423 = vmatpush1.msra.mxu0 0.0
    %1424 = vmatprep.subr.mxu0 0.0
    %1425 = vmatpush1.msra.mxu0 0.0
    %1426 = vmatprep.subr.mxu0 0.0
    %1427 = vmatpush1.msra.mxu0 0.0
    %1428 = vmatprep.subr.mxu0 0.0
    %1429 = vmatpush1.msra.mxu0 0.0
    %1430 = vmatprep.subr.mxu0 0.0
    %1431 = vmatpush1.msra.mxu0 0.0
    %1432 = vmatprep.subr.mxu0 0.0
    %1433 = vmatpush1.msra.mxu0 0.0
    %1434 = vmatprep.subr.mxu0 0.0
    %1435 = vmatpush1.msra.mxu0 0.0
    %1436 = vmatprep.subr.mxu0 0.0
    %1437 = vmatpush1.msra.mxu0 0.0
    %1438 = vmatprep.subr.mxu0 0.0
    %1439 = vmatpush1.msra.mxu0 0.0
    %1440 = vmatprep.subr.mxu0 0.0
    %1441 = vmatpush1.msra.mxu0 0.0
    %1442 = vmatprep.subr.mxu0 0.0
    %1443 = vmatpush1.msra.mxu0 0.0
    %1444 = vmatprep.subr.mxu0 0.0
    %1445 = vmatpush1.msra.mxu0 0.0
    %1446 = vmatprep.mubr.f32.mxu0 0.0
    %1447 = vmatmul.mubr.f32.gmra.mrb[0].mxu0 %v1380
    %v1448 = vpop.f32.mrb[0].mxu0
    %v1449 = vadd.f32 %v41, %v1448
    %v1450 = vpop.f32.mrb[0].mxu0
    %1451 = vdwg.mxu0
    %v1452 = vxor.u32 %v1449, 2147483648
    %v1453 = vmul.f32 %v1452, 1.442695
    %v1454 = vpow.pop %v1453
    %v1455 = vadd.f32 %v1454, 1.0
    %v1456 = vrcp.pop %v1455
    %v1457 = vmul.f32 1.0, %v1456
    %v1458 = vtanh.pop %v1449
    %v1459 = vmul.f32 %v1457, %v1264
    %1461 = vrot.lane.b32.xlu0 %v1458, 64
    %v1462 = vpop.permute.xlu0 %1461
    %v1464 = vmul.f32 %v1457, %v1462
    %1466 = vrot.lane.b32.xlu0 %v1464, 32
    %v1467 = vpop.permute.xlu0 %1466
    %v1469 = vadd.f32 %v1459, %v1467
    %v1470 = vtanh.pop %v1469
    %1472 = vrot.lane.b32.xlu0 %v1470, 64
    %v1473 = vpop.permute.xlu0 %1472
    %v1475 = vmul.f32 %v1457, %v1473
    %s1476 = scalar_lea.vmem %s0, 14
    %v1477 = vld [vmem:[%s1476] sm:$0x3]
    %v1478 = vsel %vm44, %v1372, 0
    %1480 = vmatprep.subr.mxu0 0.0
    %1481 = vmatpush1.msra.mxu0 %v24
    %1482 = vmatprep.subr.mxu0 0.0
    %1483 = vmatpush1.msra.mxu0 %v25
    %1484 = vmatprep.subr.mxu0 0.0
    %1485 = vmatpush1.msra.mxu0 %v26
    %1486 = vmatprep.subr.mxu0 0.0
    %1487 = vmatpush1.msra.mxu0 %v27
    %1488 = vmatprep.subr.mxu0 0.0
    %1489 = vmatpush1.msra.mxu0 0.0
    %1490 = vmatprep.subr.mxu0 0.0
    %1491 = vmatpush1.msra.mxu0 0.0
    %1492 = vmatprep.subr.mxu0 0.0
    %1493 = vmatpush1.msra.mxu0 0.0
    %1494 = vmatprep.subr.mxu0 0.0
    %1495 = vmatpush1.msra.mxu0 0.0
    %1496 = vmatprep.subr.mxu0 0.0
    %1497 = vmatpush1.msra.mxu0 0.0
    %1498 = vmatprep.subr.mxu0 0.0
    %1499 = vmatpush1.msra.mxu0 0.0
    %1500 = vmatprep.subr.mxu0 0.0
    %1501 = vmatpush1.msra.mxu0 0.0
    %1502 = vmatprep.subr.mxu0 0.0
    %1503 = vmatpush1.msra.mxu0 0.0
    %1504 = vmatprep.subr.mxu0 0.0
    %1505 = vmatpush1.msra.mxu0 0.0
    %1506 = vmatprep.subr.mxu0 0.0
    %1507 = vmatpush1.msra.mxu0 0.0
    %1508 = vmatprep.subr.mxu0 0.0
    %1509 = vmatpush1.msra.mxu0 0.0
    %1510 = vmatprep.subr.mxu0 0.0
    %1511 = vmatpush1.msra.mxu0 0.0
    %1512 = vmatprep.subr.mxu0 0.0
    %1513 = vmatpush1.msra.mxu0 0.0
    %1514 = vmatprep.subr.mxu0 0.0
    %1515 = vmatpush1.msra.mxu0 0.0
    %1516 = vmatprep.subr.mxu0 0.0
    %1517 = vmatpush1.msra.mxu0 0.0
    %1518 = vmatprep.subr.mxu0 0.0
    %1519 = vmatpush1.msra.mxu0 0.0
    %1520 = vmatprep.subr.mxu0 0.0
    %1521 = vmatpush1.msra.mxu0 0.0
    %1522 = vmatprep.subr.mxu0 0.0
    %1523 = vmatpush1.msra.mxu0 0.0
    %1524 = vmatprep.subr.mxu0 0.0
    %1525 = vmatpush1.msra.mxu0 0.0
    %1526 = vmatprep.subr.mxu0 0.0
    %1527 = vmatpush1.msra.mxu0 0.0
    %1528 = vmatprep.subr.mxu0 0.0
    %1529 = vmatpush1.msra.mxu0 0.0
    %1530 = vmatprep.subr.mxu0 0.0
    %1531 = vmatpush1.msra.mxu0 0.0
    %1532 = vmatprep.subr.mxu0 0.0
    %1533 = vmatpush1.msra.mxu0 0.0
    %1534 = vmatprep.subr.mxu0 0.0
    %1535 = vmatpush1.msra.mxu0 0.0
    %1536 = vmatprep.subr.mxu0 0.0
    %1537 = vmatpush1.msra.mxu0 0.0
    %1538 = vmatprep.subr.mxu0 0.0
    %1539 = vmatpush1.msra.mxu0 0.0
    %1540 = vmatprep.subr.mxu0 0.0
    %1541 = vmatpush1.msra.mxu0 0.0
    %1542 = vmatprep.subr.mxu0 0.0
    %1543 = vmatpush1.msra.mxu0 0.0
    %1544 = vmatprep.mubr.f32.mxu0 0.0
    %1545 = vmatmul.mubr.f32.gmra.mrb[0].mxu0 %v1478
    %v1546 = vpop.f32.mrb[0].mxu0
    %v1547 = vadd.f32 0.0, %v1546
    %v1548 = vpop.f32.mrb[0].mxu0
    %1549 = vdwg.mxu0
    %v1550 = vadd.f32 %v1477, %v1547
    %v1551 = vxor.u32 %v1550, 2147483648
    %v1552 = vmul.f32 %v1551, 1.442695
    %v1553 = vpow.pop %v1552
    %v1554 = vadd.f32 %v1553, 1.0
    %v1555 = vrcp.pop %v1554
    %v1556 = vmul.f32 1.0, %v1555
    %v1557 = vtanh.pop %v1550
    %v1558 = vmul.f32 %v1556, %v1363
    %1560 = vrot.lane.b32.xlu0 %v1557, 64
    %v1561 = vpop.permute.xlu0 %1560
    %v1563 = vmul.f32 %v1556, %v1561
    %1565 = vrot.lane.b32.xlu0 %v1563, 32
    %v1566 = vpop.permute.xlu0 %1565
    %v1568 = vadd.f32 %v1558, %v1566
    %v1569 = vtanh.pop %v1568
    %1571 = vrot.lane.b32.xlu0 %v1569, 64
    %v1572 = vpop.permute.xlu0 %1571
    %v1574 = vmul.f32 %v1556, %v1572
    %1576 = vrot.lane.b32.xlu0 %v1574, 32
    %v1577 = vpop.permute.xlu0 %1576
    %1580 = vrot.lane.b32.xlu0 %v1475, 64
    %v1581 = vpop.permute.xlu0 %1580
    %v1583 = vsel %vm44, %v1577, %v1581
    %v1585 = vsel %vm148, %v1583, 0
    %1587 = vmatprep.subr.mxu0 0.0
    %1588 = vmatpush1.msra.mxu0 %v28
    %1589 = vmatprep.subr.mxu0 0.0
    %1590 = vmatpush1.msra.mxu0 %v29
    %1591 = vmatprep.subr.mxu0 0.0
    %1592 = vmatpush1.msra.mxu0 %v30
    %1593 = vmatprep.subr.mxu0 0.0
    %1594 = vmatpush1.msra.mxu0 %v31
    %1595 = vmatprep.subr.mxu0 0.0
    %1596 = vmatpush1.msra.mxu0 %v32
    %1597 = vmatprep.subr.mxu0 0.0
    %1598 = vmatpush1.msra.mxu0 %v33
    %1599 = vmatprep.subr.mxu0 0.0
    %1600 = vmatpush1.msra.mxu0 %v34
    %1601 = vmatprep.subr.mxu0 0.0
    %1602 = vmatpush1.msra.mxu0 %v35
    %1603 = vmatprep.subr.mxu0 0.0
    %1604 = vmatpush1.msra.mxu0 0.0
    %1605 = vmatprep.subr.mxu0 0.0
    %1606 = vmatpush1.msra.mxu0 0.0
    %1607 = vmatprep.subr.mxu0 0.0
    %1608 = vmatpush1.msra.mxu0 0.0
    %1609 = vmatprep.subr.mxu0 0.0
    %1610 = vmatpush1.msra.mxu0 0.0
    %1611 = vmatprep.subr.mxu0 0.0
    %1612 = vmatpush1.msra.mxu0 0.0
    %1613 = vmatprep.subr.mxu0 0.0
    %1614 = vmatpush1.msra.mxu0 0.0
    %1615 = vmatprep.subr.mxu0 0.0
    %1616 = vmatpush1.msra.mxu0 0.0
    %1617 = vmatprep.subr.mxu0 0.0
    %1618 = vmatpush1.msra.mxu0 0.0
    %1619 = vmatprep.subr.mxu0 0.0
    %1620 = vmatpush1.msra.mxu0 0.0
    %1621 = vmatprep.subr.mxu0 0.0
    %1622 = vmatpush1.msra.mxu0 0.0
    %1623 = vmatprep.subr.mxu0 0.0
    %1624 = vmatpush1.msra.mxu0 0.0
    %1625 = vmatprep.subr.mxu0 0.0
    %1626 = vmatpush1.msra.mxu0 0.0
    %1627 = vmatprep.subr.mxu0 0.0
    %1628 = vmatpush1.msra.mxu0 0.0
    %1629 = vmatprep.subr.mxu0 0.0
    %1630 = vmatpush1.msra.mxu0 0.0
    %1631 = vmatprep.subr.mxu0 0.0
    %1632 = vmatpush1.msra.mxu0 0.0
    %1633 = vmatprep.subr.mxu0 0.0
    %1634 = vmatpush1.msra.mxu0 0.0
    %1635 = vmatprep.subr.mxu0 0.0
    %1636 = vmatpush1.msra.mxu0 0.0
    %1637 = vmatprep.subr.mxu0 0.0
    %1638 = vmatpush1.msra.mxu0 0.0
    %1639 = vmatprep.subr.mxu0 0.0
    %1640 = vmatpush1.msra.mxu0 0.0
    %1641 = vmatprep.subr.mxu0 0.0
    %1642 = vmatpush1.msra.mxu0 0.0
    %1643 = vmatprep.subr.mxu0 0.0
    %1644 = vmatpush1.msra.mxu0 0.0
    %1645 = vmatprep.subr.mxu0 0.0
    %1646 = vmatpush1.msra.mxu0 0.0
    %1647 = vmatprep.subr.mxu0 0.0
    %1648 = vmatpush1.msra.mxu0 0.0
    %1649 = vmatprep.subr.mxu0 0.0
    %1650 = vmatpush1.msra.mxu0 0.0
    %1651 = vmatprep.mubr.f32.mxu0 0.0
    %1652 = vmatmul.mubr.f32.gmra.mrb[0].mxu0 %v1585
    %v1653 = vpop.f32.mrb[0].mxu0
    %v1654 = vadd.f32 %v41, %v1653
    %v1655 = vpop.f32.mrb[0].mxu0
    %1656 = vdwg.mxu0
    %v1657 = vxor.u32 %v1654, 2147483648
    %v1658 = vmul.f32 %v1657, 1.442695
    %v1659 = vpow.pop %v1658
    %v1660 = vadd.f32 %v1659, 1.0
    %v1661 = vrcp.pop %v1660
    %v1662 = vmul.f32 1.0, %v1661
    %v1663 = vtanh.pop %v1654
    %v1664 = vmul.f32 %v1662, %v1469
    %1666 = vrot.lane.b32.xlu0 %v1663, 64
    %v1667 = vpop.permute.xlu0 %1666
    %v1669 = vmul.f32 %v1662, %v1667
    %1671 = vrot.lane.b32.xlu0 %v1669, 32
    %v1672 = vpop.permute.xlu0 %1671
    %v1674 = vadd.f32 %v1664, %v1672
    %v1675 = vtanh.pop %v1674
    %1677 = vrot.lane.b32.xlu0 %v1675, 64
    %v1678 = vpop.permute.xlu0 %1677
    %v1680 = vmul.f32 %v1662, %v1678
    %v1681 = vld [vmem:[%s4] sm:$0xff]
    %v1682 = vld [vmem:[%s4 + $0x8] sm:$0xff]
    %v1683 = vld [vmem:[%s4 + $0x10] sm:$0xff]
    %v1684 = vld [vmem:[%s4 + $0x18] sm:$0xff]
    %v1685 = vld [vmem:[%s5] sm:$0x1]
    %v1687 = vlaneseq
    %v1688 = vshrl.u32 %v1687, 7
    %v1689 = vsub.s32 0, %v1688
    %v1690 = vrot.slane %v1685, %v1689
    %1693 = vrot.lane.b32.xlu0 %v1680, 32
    %v1694 = vpop.permute.xlu0 %1693
    %v1695 = vsel %vm44, %v1694, 0
    %1697 = vmatprep.subr.mxu0 0.0
    %1698 = vmatpush1.msra.mxu0 %v1681
    %1699 = vmatprep.subr.mxu0 0.0
    %1700 = vmatpush1.msra.mxu0 %v1682
    %1701 = vmatprep.subr.mxu0 0.0
    %1702 = vmatpush1.msra.mxu0 %v1683
    %1703 = vmatprep.subr.mxu0 0.0
    %1704 = vmatpush1.msra.mxu0 %v1684
    %1705 = vmatprep.subr.mxu0 0.0
    %1706 = vmatpush1.msra.mxu0 0.0
    %1707 = vmatprep.subr.mxu0 0.0
    %1708 = vmatpush1.msra.mxu0 0.0
    %1709 = vmatprep.subr.mxu0 0.0
    %1710 = vmatpush1.msra.mxu0 0.0
    %1711 = vmatprep.subr.mxu0 0.0
    %1712 = vmatpush1.msra.mxu0 0.0
    %1713 = vmatprep.subr.mxu0 0.0
    %1714 = vmatpush1.msra.mxu0 0.0
    %1715 = vmatprep.subr.mxu0 0.0
    %1716 = vmatpush1.msra.mxu0 0.0
    %1717 = vmatprep.subr.mxu0 0.0
    %1718 = vmatpush1.msra.mxu0 0.0
    %1719 = vmatprep.subr.mxu0 0.0
    %1720 = vmatpush1.msra.mxu0 0.0
    %1721 = vmatprep.subr.mxu0 0.0
    %1722 = vmatpush1.msra.mxu0 0.0
    %1723 = vmatprep.subr.mxu0 0.0
    %1724 = vmatpush1.msra.mxu0 0.0
    %1725 = vmatprep.subr.mxu0 0.0
    %1726 = vmatpush1.msra.mxu0 0.0
    %1727 = vmatprep.subr.mxu0 0.0
    %1728 = vmatpush1.msra.mxu0 0.0
    %1729 = vmatprep.subr.mxu0 0.0
    %1730 = vmatpush1.msra.mxu0 0.0
    %1731 = vmatprep.subr.mxu0 0.0
    %1732 = vmatpush1.msra.mxu0 0.0
    %1733 = vmatprep.subr.mxu0 0.0
    %1734 = vmatpush1.msra.mxu0 0.0
    %1735 = vmatprep.subr.mxu0 0.0
    %1736 = vmatpush1.msra.mxu0 0.0
    %1737 = vmatprep.subr.mxu0 0.0
    %1738 = vmatpush1.msra.mxu0 0.0
    %1739 = vmatprep.subr.mxu0 0.0
    %1740 = vmatpush1.msra.mxu0 0.0
    %1741 = vmatprep.subr.mxu0 0.0
    %1742 = vmatpush1.msra.mxu0 0.0
    %1743 = vmatprep.subr.mxu0 0.0
    %1744 = vmatpush1.msra.mxu0 0.0
    %1745 = vmatprep.subr.mxu0 0.0
    %1746 = vmatpush1.msra.mxu0 0.0
    %1747 = vmatprep.subr.mxu0 0.0
    %1748 = vmatpush1.msra.mxu0 0.0
    %1749 = vmatprep.subr.mxu0 0.0
    %1750 = vmatpush1.msra.mxu0 0.0
    %1751 = vmatprep.subr.mxu0 0.0
    %1752 = vmatpush1.msra.mxu0 0.0
    %1753 = vmatprep.subr.mxu0 0.0
    %1754 = vmatpush1.msra.mxu0 0.0
    %1755 = vmatprep.subr.mxu0 0.0
    %1756 = vmatpush1.msra.mxu0 0.0
    %1757 = vmatprep.subr.mxu0 0.0
    %1758 = vmatpush1.msra.mxu0 0.0
    %1759 = vmatprep.subr.mxu0 0.0
    %1760 = vmatpush1.msra.mxu0 0.0
    %1761 = vmatprep.mubr.f32.mxu0 0.0
    %1762 = vmatmul.mubr.f32.gmra.mrb[0].mxu0 %v1695
    %v1763 = vpop.f32.mrb[0].mxu0
    %v1764 = vadd.f32 %v1690, %v1763
    %v1765 = vpop.f32.mrb[0].mxu0
    %1766 = vdwg.mxu0
    %1767 = vst [vmem:[#allocation2] sm:$0x3] %v1764
    // Predicated region
    $region26: #{net_forward.1} parent=1 // pred_check
      _
    $region27: #{net_forward.1} parent=1 // pred_check_branch
      %1769 = sbr.rel (0) target = $region29
    $region28: #{net_forward.1} parent=1 // pred_region
      %s1771 = ssub.s32 32, 32
      %1772 = vsyncadd [#allocation3], %s1771
      %s1774 = sshll.u32 [#allocation2], 4
      %s1775 = int_to_ptr.vmem [resolvable:$true] %s1774
      %1777 = dma.vmem_to_hbm [thread:$0]  %s1775, 32, %s6, [#allocation3]
    $region29: #{net_forward.1} parent=1 // pred_fallthru
      _
    // Predicated region
    $region30: #{net_forward.1} parent=1 // pred_check
      _
    $region31: #{net_forward.1} parent=1 // pred_check_branch
      %1779 = sbr.rel (0) target = $region33
    $region32: #{net_forward.1} parent=1 // pred_region
      %1780 = dma.done [#allocation3], 32
    $region33: #{net_forward.1} parent=1 // pred_fallthru
      _
    %1781 = vsyncpa [#allocation3], 1

</llo_original>
